<compile_context>
chip_gen: v7x
topology: tpu7x:2x2x1
jax: 0.10.0
libtpu: 0.0.40
codegen_flags: <defaults>
</compile_context>

<pallas_src>
import functools

import jax
import jax.numpy as jnp
from jax.experimental import pallas as pl
from jax.experimental.pallas import tpu as pltpu

HIDDEN = 512  # NoisyLinear hidden width


# ----------------------------------------------------------------------------
# Fused Pallas kernel: conv1 matmul + conv2 + conv3 + dueling noisy head
# ----------------------------------------------------------------------------
def _dqn_fused_kernel(p1_ref, w1_ref, b1_ref, w2_ref, b2_ref, w3_ref, b3_ref,
                      wh1_ref, bh1_ref, wh2_ref, bh2_ref, o_ref,
                      *, batch, n_actions):
    B = batch
    f32 = jnp.float32
    bf16 = jnp.bfloat16

    # conv1: patches (64B, 256) @ (256, 32); rows ordered r = (h*8 + w)*B + b.
    y1 = jnp.maximum(
        jnp.dot(p1_ref[...], w1_ref[...], preferred_element_type=f32)
        + b1_ref[...], 0.0)                                        # (64B, 32) f32

    # conv2: 4x4 stride 2 on the 8x8 map -> 3x3.  Patch element for tap (i, j) of
    # output (ho, wo, b) lives at row base + (8i + j)*B with base = (16ho + 2wo)*B + b,
    # so each tap is a static row-slice; concat the 16 taps along lanes -> im2col.
    L2 = 37 * B                                                    # covers all valid bases
    taps2 = [y1[(8 * i + j) * B:(8 * i + j) * B + L2, :]
             for i in range(4) for j in range(4)]
    p2 = jnp.concatenate(taps2, axis=1).astype(bf16)               # (37B, 512)
    y2 = jnp.maximum(
        jnp.dot(p2, w2_ref[...], preferred_element_type=f32)
        + b2_ref[...], 0.0)                                        # (37B, 64) f32

    # conv3: 3x3 stride 1 on the 3x3 map -> 1x1.  Valid conv2 rows sit at
    # (16i + 2j)*B + b, so the 9 taps are (B, 64) row-slices; lane-concat -> (B, 576).
    taps3 = [y2[(16 * i + 2 * j) * B:(16 * i + 2 * j) * B + B, :]
             for i in range(3) for j in range(3)]
    p3 = jnp.concatenate(taps3, axis=1).astype(bf16)               # (B, 576)
    feat = jnp.maximum(
        jnp.dot(p3, w3_ref[...], preferred_element_type=f32)
        + b3_ref[...], 0.0)                                        # (B, 64) f32

    # Dueling noisy head.
    # hidden: feat @ [wv1 | wa1] -> h = [hv | ha]                  (B, 1024)
    h = jnp.maximum(
        jnp.dot(feat.astype(bf16), wh1_ref[...], preferred_element_type=f32)
        + bh1_ref[...], 0.0)
    # outputs: block-diag(wv2, wa2): col 0 = value, cols 1..A = advantage.
    out2 = jnp.dot(h.astype(bf16), wh2_ref[...],
                   preferred_element_type=f32) + bh2_ref[...]      # (B, 1+A)
    v = out2[:, 0:1]
    adv = out2[:, 1:1 + n_actions]
    # q = value + advantage - advantage.mean()   (global mean, as in the module)
    mean_a = jnp.sum(adv, axis=(0, 1), keepdims=True) / (B * n_actions)
    o_ref[...] = v + adv - mean_a


def pallas_dqn_fused(p1, pp, batch, n_actions):
    args = (p1, pp["w1"], pp["b1"], pp["w2"], pp["b2"], pp["w3"], pp["b3"],
            pp["wh1"], pp["bh1"], pp["wh2"], pp["bh2"])
    vmem = pl.BlockSpec(memory_space=pltpu.MemorySpace.VMEM)
    return pl.pallas_call(
        functools.partial(_dqn_fused_kernel, batch=batch, n_actions=n_actions),
        out_shape=jax.ShapeDtypeStruct((batch, n_actions), jnp.float32),
        in_specs=[vmem] * len(args),
        out_specs=vmem,
    )(*args)


# ----------------------------------------------------------------------------
# XLA glue: conv1 im2col on the raw input (rows ordered (ho, wo, b))
# ----------------------------------------------------------------------------
def im2col_conv1(x, k, s):
    """x: (B, H, W, C) -> patches (Ho*Wo*B, k*k*C); rows (ho, wo, b), cols (kh, kw, c)."""
    B, H, W, C = x.shape
    Ho = (H - k) // s + 1
    Wo = (W - k) // s + 1
    cols = []
    for i in range(k):
        for j in range(k):
            cols.append(x[:, i:i + s * Ho:s, j:j + s * Wo:s, :])   # (B, Ho, Wo, C)
    p = jnp.stack(cols, axis=3)                                    # (B, Ho, Wo, kk, C)
    p = jnp.transpose(p, (1, 2, 0, 3, 4))                          # (Ho, Wo, B, kk, C)
    return p.reshape(Ho * Wo * B, k * k * C), Ho, Wo


# ----------------------------------------------------------------------------
# Deterministic parameter construction (same math as the PyTorch module)
# ----------------------------------------------------------------------------
def init_conv(key, cin, cout, k):
    k1, k2 = jax.random.split(key)
    bound = 1.0 / float(cin * k * k) ** 0.5
    w = jax.random.uniform(k1, (cout, cin, k, k), jnp.float32, -bound, bound)
    b = jax.random.uniform(k2, (cout,), jnp.float32, -bound, bound)
    return w, b


def _scale_noise(key, n):
    x = jax.random.normal(key, (n,), jnp.float32)
    return jnp.sign(x) * jnp.sqrt(jnp.abs(x))


def init_noisy_linear(key, in_f, out_f, sigma0=0.5):
    k1, k2, k3, k4 = jax.random.split(key, 4)
    bound = 1.0 / float(in_f) ** 0.5
    w_mu = jax.random.uniform(k1, (in_f, out_f), jnp.float32, -bound, bound)
    b_mu = jax.random.uniform(k2, (out_f,), jnp.float32, -bound, bound)
    w_sigma = jnp.full((in_f, out_f), sigma0 / float(in_f) ** 0.5, jnp.float32)
    b_sigma = jnp.full((out_f,), sigma0 / float(in_f) ** 0.5, jnp.float32)
    eps_in = _scale_noise(k3, in_f)
    eps_out = _scale_noise(k4, out_f)
    w = w_mu + w_sigma * (eps_in[:, None] * eps_out[None, :])   # effective weight
    b = b_mu + b_sigma * eps_out                                # effective bias
    return w, b


def init_dqn_params(key, in_channels, conv_out, n_actions, hidden=HIDDEN):
    keys = jax.random.split(key, 7)
    p = {}
    p["cw1"], p["cb1"] = init_conv(keys[0], in_channels, 32, 8)
    p["cw2"], p["cb2"] = init_conv(keys[1], 32, 64, 4)
    p["cw3"], p["cb3"] = init_conv(keys[2], 64, 64, 3)
    p["wv1"], p["bv1"] = init_noisy_linear(keys[3], conv_out, hidden)
    p["wv2"], p["bv2"] = init_noisy_linear(keys[4], hidden, 1)
    p["wa1"], p["ba1"] = init_noisy_linear(keys[5], conv_out, hidden)
    p["wa2"], p["ba2"] = init_noisy_linear(keys[6], hidden, n_actions)
    return p


def prepare_params(p, n_actions, hidden=HIDDEN):
    """Dense bf16 weight matrices consumed by the fused kernel (no channel padding)."""
    def conv_mat(w, b):
        cout, cin, k, _ = w.shape
        wm = jnp.transpose(w, (2, 3, 1, 0)).reshape(k * k * cin, cout)   # (kh,kw,cin) rows
        return wm.astype(jnp.bfloat16), b.reshape(1, cout).astype(jnp.float32)

    pp = {}
    pp["w1"], pp["b1"] = conv_mat(p["cw1"], p["cb1"])      # (256, 32)
    pp["w2"], pp["b2"] = conv_mat(p["cw2"], p["cb2"])      # (512, 64)
    pp["w3"], pp["b3"] = conv_mat(p["cw3"], p["cb3"])      # (576, 64)

    # Hidden layers: feat @ [wv1 | wa1]  -> (64, 1024)
    pp["wh1"] = jnp.concatenate([p["wv1"], p["wa1"]], axis=1).astype(jnp.bfloat16)
    pp["bh1"] = jnp.concatenate([p["bv1"], p["ba1"]]).reshape(1, 2 * hidden).astype(jnp.float32)

    # Output layers: block-diagonal (1024, 1 + A): col 0 = value, cols 1..A = advantage.
    w2blk = jnp.zeros((2 * hidden, 1 + n_actions), jnp.float32)
    w2blk = w2blk.at[:hidden, 0:1].set(p["wv2"])
    w2blk = w2blk.at[hidden:, 1:].set(p["wa2"])
    b2blk = jnp.concatenate([p["bv2"], p["ba2"]]).reshape(1, 1 + n_actions)
    pp["wh2"] = w2blk.astype(jnp.bfloat16)
    pp["bh2"] = b2blk.astype(jnp.float32)
    return pp


# ----------------------------------------------------------------------------
# Forward pass (single fused Pallas kernel + minimal XLA glue on the input)
# ----------------------------------------------------------------------------
def dqn_forward(x, pp, n_actions):
    B = x.shape[0]
    # Layout change at the module boundary: NCHW -> NHWC, cast to bf16.
    xh = jnp.transpose(x, (0, 2, 3, 1)).astype(jnp.bfloat16)
    p1, ho1, wo1 = im2col_nhwc_conv1(xh)
    assert (ho1, wo1) == (8, 8), "fused kernel is specialized to 36x36 inputs"
    return pallas_dqn_fused(p1, pp, B, n_actions)


def im2col_nhwc_conv1(xh):
    return im2col_conv1(xh, 8, 4)


# Pure-JAX reference.  Operands are rounded to bf16 at the same points as the
# Pallas path (matmul/conv inputs), with f32 accumulation / bias / ReLU, so the
# check isolates kernel correctness from the intentional mixed-precision choice.
def dqn_reference(x, p):
    r = lambda t: t.astype(jnp.bfloat16).astype(jnp.float32)

    def conv(x, w, b, s):
        y = jax.lax.conv_general_dilated(
            r(x), r(w), (s, s), "VALID",
            dimension_numbers=("NCHW", "OIHW", "NCHW"))
        return jnp.maximum(y + b[None, :, None, None], 0.0)

    x1 = conv(x, p["cw1"], p["cb1"], 4)
    x2 = conv(x1, p["cw2"], p["cb2"], 2)
    x3 = conv(x2, p["cw3"], p["cb3"], 1)
    feat = x3.reshape(x3.shape[0], -1)                            # nn.Flatten (spatial 1x1)
    hv = jnp.maximum(r(feat) @ r(p["wv1"]) + p["bv1"], 0.0)
    v = r(hv) @ r(p["wv2"]) + p["bv2"]
    ha = jnp.maximum(r(feat) @ r(p["wa1"]) + p["ba1"], 0.0)
    a = r(ha) @ r(p["wa2"]) + p["ba2"]
    return v + a - jnp.mean(a)


if __name__ == "__main__":
    # Shapes consistent with the module: input NCHW = (2, 4, 36, 36)
    # -> conv spatial 8 -> 3 -> 1, conv feature dim = 64 * 1 * 1 = 64.
    B, C, H, W = 2, 4, 36, 36
    N_ACTIONS = 6
    CONV_OUT = 64

    key = jax.random.PRNGKey(0)
    kx, kp = jax.random.split(key)
    x = jax.random.normal(kx, (B, C, H, W), jnp.float32)
    raw_params = init_dqn_params(kp, C, CONV_OUT, N_ACTIONS)
    packed_params = prepare_params(raw_params, N_ACTIONS)

    fwd = jax.jit(functools.partial(dqn_forward, n_actions=N_ACTIONS))
    out = jax.block_until_ready(fwd(x, packed_params))
    ref = jax.block_until_ready(dqn_reference(x, raw_params))

    assert out.shape == (B, N_ACTIONS)
    assert bool(jnp.all(jnp.isfinite(out)))
    assert jnp.allclose(out, ref, atol=1e-2, rtol=1e-2), (out, ref)
    print("KERNEL_OK")
</pallas_src>

<mosaic_0001>
module attributes {stable_mosaic.version = 11 : i64} {
  func.func @_dqn_fused_kernel(%arg0: memref<128x256xbf16, #tpu.memory_space<vmem>>, %arg1: memref<256x32xbf16, #tpu.memory_space<vmem>>, %arg2: memref<1x32xf32, #tpu.memory_space<vmem>>, %arg3: memref<512x64xbf16, #tpu.memory_space<vmem>>, %arg4: memref<1x64xf32, #tpu.memory_space<vmem>>, %arg5: memref<576x64xbf16, #tpu.memory_space<vmem>>, %arg6: memref<1x64xf32, #tpu.memory_space<vmem>>, %arg7: memref<64x1024xbf16, #tpu.memory_space<vmem>>, %arg8: memref<1x1024xf32, #tpu.memory_space<vmem>>, %arg9: memref<1024x7xbf16, #tpu.memory_space<vmem>>, %arg10: memref<1x7xf32, #tpu.memory_space<vmem>>, %arg11: memref<2x6xf32, #tpu.memory_space<vmem>>) attributes {dimension_semantics = [], scalar_prefetch = 0 : i64, scratch_operands = 0 : i64, tpu.core_type = #tpu.core_type<tc>} {
    %c0 = arith.constant 0 : index
    %c0_0 = arith.constant 0 : index
    %0 = vector.load %arg0[%c0, %c0_0] : memref<128x256xbf16, #tpu.memory_space<vmem>>, vector<128x256xbf16>
    %c0_1 = arith.constant 0 : index
    %c0_2 = arith.constant 0 : index
    %1 = vector.load %arg1[%c0_1, %c0_2] : memref<256x32xbf16, #tpu.memory_space<vmem>>, vector<256x32xbf16>
    %cst = arith.constant dense<0.000000e+00> : vector<128x32xf32>
    %2 = tpu.matmul %0, %1, %cst {dimension_numbers = #tpu.dot_dimension_numbers<[1], [0], [0], [1], [0, 0, 1, 1], [], []>} : vector<128x256xbf16>, vector<256x32xbf16>, vector<128x32xf32> -> vector<128x32xf32>
    %c0_3 = arith.constant 0 : index
    %c0_4 = arith.constant 0 : index
    %3 = vector.load %arg2[%c0_3, %c0_4] : memref<1x32xf32, #tpu.memory_space<vmem>>, vector<1x32xf32>
    %4 = vector.broadcast %3 : vector<1x32xf32> to vector<128x32xf32>
    %5 = arith.addf %2, %4 : vector<128x32xf32>
    %cst_5 = arith.constant 0.000000e+00 : f32
    %6 = vector.broadcast %cst_5 : f32 to vector<128x32xf32>
    %7 = arith.maximumf %5, %6 : vector<128x32xf32>
    %8 = vector.extract_strided_slice %7 {offsets = [0, 0], sizes = [74, 32], strides = [1, 1]} : vector<128x32xf32> to vector<74x32xf32>
    %9 = vector.extract_strided_slice %7 {offsets = [2, 0], sizes = [74, 32], strides = [1, 1]} : vector<128x32xf32> to vector<74x32xf32>
    %10 = vector.extract_strided_slice %7 {offsets = [4, 0], sizes = [74, 32], strides = [1, 1]} : vector<128x32xf32> to vector<74x32xf32>
    %11 = vector.extract_strided_slice %7 {offsets = [6, 0], sizes = [74, 32], strides = [1, 1]} : vector<128x32xf32> to vector<74x32xf32>
    %12 = vector.extract_strided_slice %7 {offsets = [16, 0], sizes = [74, 32], strides = [1, 1]} : vector<128x32xf32> to vector<74x32xf32>
    %13 = vector.extract_strided_slice %7 {offsets = [18, 0], sizes = [74, 32], strides = [1, 1]} : vector<128x32xf32> to vector<74x32xf32>
    %14 = vector.extract_strided_slice %7 {offsets = [20, 0], sizes = [74, 32], strides = [1, 1]} : vector<128x32xf32> to vector<74x32xf32>
    %15 = vector.extract_strided_slice %7 {offsets = [22, 0], sizes = [74, 32], strides = [1, 1]} : vector<128x32xf32> to vector<74x32xf32>
    %16 = vector.extract_strided_slice %7 {offsets = [32, 0], sizes = [74, 32], strides = [1, 1]} : vector<128x32xf32> to vector<74x32xf32>
    %17 = vector.extract_strided_slice %7 {offsets = [34, 0], sizes = [74, 32], strides = [1, 1]} : vector<128x32xf32> to vector<74x32xf32>
    %18 = vector.extract_strided_slice %7 {offsets = [36, 0], sizes = [74, 32], strides = [1, 1]} : vector<128x32xf32> to vector<74x32xf32>
    %19 = vector.extract_strided_slice %7 {offsets = [38, 0], sizes = [74, 32], strides = [1, 1]} : vector<128x32xf32> to vector<74x32xf32>
    %20 = vector.extract_strided_slice %7 {offsets = [48, 0], sizes = [74, 32], strides = [1, 1]} : vector<128x32xf32> to vector<74x32xf32>
    %21 = vector.extract_strided_slice %7 {offsets = [50, 0], sizes = [74, 32], strides = [1, 1]} : vector<128x32xf32> to vector<74x32xf32>
    %22 = vector.extract_strided_slice %7 {offsets = [52, 0], sizes = [74, 32], strides = [1, 1]} : vector<128x32xf32> to vector<74x32xf32>
    %23 = vector.extract_strided_slice %7 {offsets = [54, 0], sizes = [74, 32], strides = [1, 1]} : vector<128x32xf32> to vector<74x32xf32>
    %24 = tpu.concatenate %8, %9, %10, %11, %12, %13, %14, %15, %16, %17, %18, %19, %20, %21, %22, %23 in 1 : vector<74x32xf32>, vector<74x32xf32>, vector<74x32xf32>, vector<74x32xf32>, vector<74x32xf32>, vector<74x32xf32>, vector<74x32xf32>, vector<74x32xf32>, vector<74x32xf32>, vector<74x32xf32>, vector<74x32xf32>, vector<74x32xf32>, vector<74x32xf32>, vector<74x32xf32>, vector<74x32xf32>, vector<74x32xf32> -> vector<74x512xf32>
    %25 = arith.truncf %24 : vector<74x512xf32> to vector<74x512xbf16>
    %c0_6 = arith.constant 0 : index
    %c0_7 = arith.constant 0 : index
    %26 = vector.load %arg3[%c0_6, %c0_7] : memref<512x64xbf16, #tpu.memory_space<vmem>>, vector<512x64xbf16>
    %cst_8 = arith.constant dense<0.000000e+00> : vector<74x64xf32>
    %27 = tpu.matmul %25, %26, %cst_8 {dimension_numbers = #tpu.dot_dimension_numbers<[1], [0], [0], [1], [0, 0, 1, 1], [], []>} : vector<74x512xbf16>, vector<512x64xbf16>, vector<74x64xf32> -> vector<74x64xf32>
    %c0_9 = arith.constant 0 : index
    %c0_10 = arith.constant 0 : index
    %28 = vector.load %arg4[%c0_9, %c0_10] : memref<1x64xf32, #tpu.memory_space<vmem>>, vector<1x64xf32>
    %29 = vector.broadcast %28 : vector<1x64xf32> to vector<74x64xf32>
    %30 = arith.addf %27, %29 : vector<74x64xf32>
    %cst_11 = arith.constant 0.000000e+00 : f32
    %31 = vector.broadcast %cst_11 : f32 to vector<74x64xf32>
    %32 = arith.maximumf %30, %31 : vector<74x64xf32>
    %33 = vector.extract_strided_slice %32 {offsets = [0, 0], sizes = [2, 64], strides = [1, 1]} : vector<74x64xf32> to vector<2x64xf32>
    %34 = vector.extract_strided_slice %32 {offsets = [4, 0], sizes = [2, 64], strides = [1, 1]} : vector<74x64xf32> to vector<2x64xf32>
    %35 = vector.extract_strided_slice %32 {offsets = [8, 0], sizes = [2, 64], strides = [1, 1]} : vector<74x64xf32> to vector<2x64xf32>
    %36 = vector.extract_strided_slice %32 {offsets = [32, 0], sizes = [2, 64], strides = [1, 1]} : vector<74x64xf32> to vector<2x64xf32>
    %37 = vector.extract_strided_slice %32 {offsets = [36, 0], sizes = [2, 64], strides = [1, 1]} : vector<74x64xf32> to vector<2x64xf32>
    %38 = vector.extract_strided_slice %32 {offsets = [40, 0], sizes = [2, 64], strides = [1, 1]} : vector<74x64xf32> to vector<2x64xf32>
    %39 = vector.extract_strided_slice %32 {offsets = [64, 0], sizes = [2, 64], strides = [1, 1]} : vector<74x64xf32> to vector<2x64xf32>
    %40 = vector.extract_strided_slice %32 {offsets = [68, 0], sizes = [2, 64], strides = [1, 1]} : vector<74x64xf32> to vector<2x64xf32>
    %41 = vector.extract_strided_slice %32 {offsets = [72, 0], sizes = [2, 64], strides = [1, 1]} : vector<74x64xf32> to vector<2x64xf32>
    %42 = tpu.concatenate %33, %34, %35, %36, %37, %38, %39, %40, %41 in 1 : vector<2x64xf32>, vector<2x64xf32>, vector<2x64xf32>, vector<2x64xf32>, vector<2x64xf32>, vector<2x64xf32>, vector<2x64xf32>, vector<2x64xf32>, vector<2x64xf32> -> vector<2x576xf32>
    %43 = arith.truncf %42 : vector<2x576xf32> to vector<2x576xbf16>
    %c0_12 = arith.constant 0 : index
    %c0_13 = arith.constant 0 : index
    %44 = vector.load %arg5[%c0_12, %c0_13] : memref<576x64xbf16, #tpu.memory_space<vmem>>, vector<576x64xbf16>
    %cst_14 = arith.constant dense<0.000000e+00> : vector<2x64xf32>
    %45 = tpu.matmul %43, %44, %cst_14 {dimension_numbers = #tpu.dot_dimension_numbers<[1], [0], [0], [1], [0, 0, 1, 1], [], []>} : vector<2x576xbf16>, vector<576x64xbf16>, vector<2x64xf32> -> vector<2x64xf32>
    %c0_15 = arith.constant 0 : index
    %c0_16 = arith.constant 0 : index
    %46 = vector.load %arg6[%c0_15, %c0_16] : memref<1x64xf32, #tpu.memory_space<vmem>>, vector<1x64xf32>
    %47 = vector.broadcast %46 : vector<1x64xf32> to vector<2x64xf32>
    %48 = arith.addf %45, %47 : vector<2x64xf32>
    %cst_17 = arith.constant 0.000000e+00 : f32
    %49 = vector.broadcast %cst_17 : f32 to vector<2x64xf32>
    %50 = arith.maximumf %48, %49 : vector<2x64xf32>
    %51 = arith.truncf %50 : vector<2x64xf32> to vector<2x64xbf16>
    %c0_18 = arith.constant 0 : index
    %c0_19 = arith.constant 0 : index
    %52 = vector.load %arg7[%c0_18, %c0_19] : memref<64x1024xbf16, #tpu.memory_space<vmem>>, vector<64x1024xbf16>
    %cst_20 = arith.constant dense<0.000000e+00> : vector<2x1024xf32>
    %53 = tpu.matmul %51, %52, %cst_20 {dimension_numbers = #tpu.dot_dimension_numbers<[1], [0], [0], [1], [0, 0, 1, 1], [], []>} : vector<2x64xbf16>, vector<64x1024xbf16>, vector<2x1024xf32> -> vector<2x1024xf32>
    %c0_21 = arith.constant 0 : index
    %c0_22 = arith.constant 0 : index
    %54 = vector.load %arg8[%c0_21, %c0_22] : memref<1x1024xf32, #tpu.memory_space<vmem>>, vector<1x1024xf32>
    %55 = vector.broadcast %54 : vector<1x1024xf32> to vector<2x1024xf32>
    %56 = arith.addf %53, %55 : vector<2x1024xf32>
    %cst_23 = arith.constant 0.000000e+00 : f32
    %57 = vector.broadcast %cst_23 : f32 to vector<2x1024xf32>
    %58 = arith.maximumf %56, %57 : vector<2x1024xf32>
    %59 = arith.truncf %58 : vector<2x1024xf32> to vector<2x1024xbf16>
    %c0_24 = arith.constant 0 : index
    %c0_25 = arith.constant 0 : index
    %60 = vector.load %arg9[%c0_24, %c0_25] : memref<1024x7xbf16, #tpu.memory_space<vmem>>, vector<1024x7xbf16>
    %cst_26 = arith.constant dense<0.000000e+00> : vector<2x7xf32>
    %61 = tpu.matmul %59, %60, %cst_26 {dimension_numbers = #tpu.dot_dimension_numbers<[1], [0], [0], [1], [0, 0, 1, 1], [], []>} : vector<2x1024xbf16>, vector<1024x7xbf16>, vector<2x7xf32> -> vector<2x7xf32>
    %c0_27 = arith.constant 0 : index
    %c0_28 = arith.constant 0 : index
    %62 = vector.load %arg10[%c0_27, %c0_28] : memref<1x7xf32, #tpu.memory_space<vmem>>, vector<1x7xf32>
    %63 = vector.broadcast %62 : vector<1x7xf32> to vector<2x7xf32>
    %64 = arith.addf %61, %63 : vector<2x7xf32>
    %65 = vector.extract_strided_slice %64 {offsets = [0, 0], sizes = [2, 1], strides = [1, 1]} : vector<2x7xf32> to vector<2x1xf32>
    %66 = vector.extract_strided_slice %64 {offsets = [0, 1], sizes = [2, 6], strides = [1, 1]} : vector<2x7xf32> to vector<2x6xf32>
    %67 = vector.shape_cast %66 : vector<2x6xf32> to vector<1x2x6xf32>
    %cst_29 = arith.constant dense<0.000000e+00> : vector<1xf32>
    %68 = vector.multi_reduction <add>, %67, %cst_29 [1, 2] : vector<1x2x6xf32> to vector<1xf32>
    %69 = vector.shape_cast %68 : vector<1xf32> to vector<1x1x1xf32>
    %70 = vector.extract %69[0, 0, 0] : f32 from vector<1x1x1xf32>
    %71 = vector.broadcast %70 : f32 to vector<1x1xf32>
    %cst_30 = arith.constant 1.200000e+01 : f32
    %72 = vector.broadcast %cst_30 : f32 to vector<1x1xf32>
    %73 = arith.divf %71, %72 : vector<1x1xf32>
    %74 = vector.broadcast %65 : vector<2x1xf32> to vector<2x6xf32>
    %75 = arith.addf %74, %66 : vector<2x6xf32>
    %76 = vector.broadcast %73 : vector<1x1xf32> to vector<2x6xf32>
    %77 = arith.subf %75, %76 : vector<2x6xf32>
    %c0_31 = arith.constant 0 : index
    %c0_32 = arith.constant 0 : index
    %78 = vector.load %arg11[%c0_31, %c0_32] : memref<2x6xf32, #tpu.memory_space<vmem>>, vector<2x6xf32>
    tpu.vector_store %arg11[%c0_31, %c0_32], %77 {strides = array<i32>} : memref<2x6xf32, #tpu.memory_space<vmem>>, vector<2x6xf32>,
    return
  }
}

</mosaic_0001>

<llo_original>
// kernel: dqn_forward.1
$region0: #{dqn_forward.1}
  #allocation0 [shape = 'u32[]', space=smem, size = 0x4, offset = 0x4, fixed_abs, tag = 'smem constant byte address 0x4 - core index']
  #allocation1 [shape = 'u32[144,128]{1,0:T(1,128)}', space=vmem, size = 0x12000, scoped, tag = 'internal scratch']
  %s0 = inlined_call_operand.vmem [shape: bf16[128,256], index: 0, kind: input, shape index: {}]
  %s1 = inlined_call_operand.vmem [shape: bf16[256,32], index: 1, kind: input, shape index: {}]
  %s2 = inlined_call_operand.vmem [shape: f32[1,32], index: 2, kind: input, shape index: {}]
  %s3 = inlined_call_operand.vmem [shape: bf16[512,64], index: 3, kind: input, shape index: {}]
  %s4 = inlined_call_operand.vmem [shape: f32[1,64], index: 4, kind: input, shape index: {}]
  %s5 = inlined_call_operand.vmem [shape: bf16[576,64], index: 5, kind: input, shape index: {}]
  %s6 = inlined_call_operand.vmem [shape: f32[1,64], index: 6, kind: input, shape index: {}]
  %s7 = inlined_call_operand.vmem [shape: bf16[64,1024], index: 7, kind: input, shape index: {}]
  %s8 = inlined_call_operand.vmem [shape: f32[1,1024], index: 8, kind: input, shape index: {}]
  %s9 = inlined_call_operand.vmem [shape: bf16[1024,7], index: 9, kind: input, shape index: {}]
  %s10 = inlined_call_operand.vmem [shape: f32[1,7], index: 10, kind: input, shape index: {}]
  %s11 = inlined_call_operand.hbm [shape: f32[2,6], index: 11, kind: output, shape index: {}]
  %s12 = sld [smem:[#allocation0]]
  $region54: #{dqn_forward.1} parent=0
    _
  %s14 = ssub.s32 1, %s12
  %s15 = scalar_select 0, %s14, %s12
  $region1: #{dqn_forward.1} parent=0
    #allocation2 [shape = 'u8[1024]{0}', space=vmem, size = 0x400, scoped, tag = 'output window, operand 0, single buffered']
    #allocation3 [shape = 's32[1]{0}', space=sflag, size = 0x4, scoped, tag = 'scoped memory for dqn_forward.1']
    %16 = vsyncpa [#allocation3], 0
    // Predicated region
    $region2: #{dqn_forward.1} parent=1 // pred_check
      _
    $region3: #{dqn_forward.1} parent=1 // pred_check_branch
      %18 = sbr.rel (0) target = $region5
    $region4: #{dqn_forward.1} parent=1 // pred_region
      _
    $region5: #{dqn_forward.1} parent=1 // pred_fallthru
      _
    // Predicated region
    $region6: #{dqn_forward.1} parent=1 // pred_check
      _
    $region7: #{dqn_forward.1} parent=1 // pred_check_branch
      %20 = sbr.rel (0) target = $region9
    $region8: #{dqn_forward.1} parent=1 // pred_region
      _
    $region9: #{dqn_forward.1} parent=1 // pred_fallthru
      _
    // Predicated region
    $region10: #{dqn_forward.1} parent=1 // pred_check
      _
    $region11: #{dqn_forward.1} parent=1 // pred_check_branch
      %22 = sbr.rel (0) target = $region13
    $region12: #{dqn_forward.1} parent=1 // pred_region
      _
    $region13: #{dqn_forward.1} parent=1 // pred_fallthru
      _
    // Predicated region
    $region14: #{dqn_forward.1} parent=1 // pred_check
      _
    $region15: #{dqn_forward.1} parent=1 // pred_check_branch
      %24 = sbr.rel (0) target = $region17
    $region16: #{dqn_forward.1} parent=1 // pred_region
      _
    $region17: #{dqn_forward.1} parent=1 // pred_fallthru
      _
    // Predicated region
    $region18: #{dqn_forward.1} parent=1 // pred_check
      _
    $region19: #{dqn_forward.1} parent=1 // pred_check_branch
      %26 = sbr.rel (0) target = $region21
    $region20: #{dqn_forward.1} parent=1 // pred_region
      _
    $region21: #{dqn_forward.1} parent=1 // pred_fallthru
      _
    // Predicated region
    $region22: #{dqn_forward.1} parent=1 // pred_check
      _
    $region23: #{dqn_forward.1} parent=1 // pred_check_branch
      %28 = sbr.rel (0) target = $region25
    $region24: #{dqn_forward.1} parent=1 // pred_region
      _
    $region25: #{dqn_forward.1} parent=1 // pred_fallthru
      _
    // Predicated region
    $region26: #{dqn_forward.1} parent=1 // pred_check
      _
    $region27: #{dqn_forward.1} parent=1 // pred_check_branch
      %30 = sbr.rel (0) target = $region29
    $region28: #{dqn_forward.1} parent=1 // pred_region
      _
    $region29: #{dqn_forward.1} parent=1 // pred_fallthru
      _
    // Predicated region
    $region30: #{dqn_forward.1} parent=1 // pred_check
      _
    $region31: #{dqn_forward.1} parent=1 // pred_check_branch
      %32 = sbr.rel (0) target = $region33
    $region32: #{dqn_forward.1} parent=1 // pred_region
      _
    $region33: #{dqn_forward.1} parent=1 // pred_fallthru
      _
    // Predicated region
    $region34: #{dqn_forward.1} parent=1 // pred_check
      _
    $region35: #{dqn_forward.1} parent=1 // pred_check_branch
      %34 = sbr.rel (0) target = $region37
    $region36: #{dqn_forward.1} parent=1 // pred_region
      _
    $region37: #{dqn_forward.1} parent=1 // pred_fallthru
      _
    // Predicated region
    $region38: #{dqn_forward.1} parent=1 // pred_check
      _
    $region39: #{dqn_forward.1} parent=1 // pred_check_branch
      %36 = sbr.rel (0) target = $region41
    $region40: #{dqn_forward.1} parent=1 // pred_region
      _
    $region41: #{dqn_forward.1} parent=1 // pred_fallthru
      _
    // Predicated region
    $region42: #{dqn_forward.1} parent=1 // pred_check
      _
    $region43: #{dqn_forward.1} parent=1 // pred_check_branch
      %38 = sbr.rel (0) target = $region45
    $region44: #{dqn_forward.1} parent=1 // pred_region
      _
    $region45: #{dqn_forward.1} parent=1 // pred_fallthru
      _
    %v40 = vld [vmem:[%s0] sm:$0xff]
    %v41 = vld [vmem:[%s0 + $0x8] sm:$0xff]
    %v42 = vld [vmem:[%s0 + $0x10] sm:$0xff]
    %v43 = vld [vmem:[%s0 + $0x18] sm:$0xff]
    %v44 = vld [vmem:[%s0 + $0x20] sm:$0xff]
    %v45 = vld [vmem:[%s0 + $0x28] sm:$0xff]
    %v46 = vld [vmem:[%s0 + $0x30] sm:$0xff]
    %v47 = vld [vmem:[%s0 + $0x38] sm:$0xff]
    %v48 = vld [vmem:[%s0 + $0x40] sm:$0xff]
    %v49 = vld [vmem:[%s0 + $0x48] sm:$0xff]
    %v50 = vld [vmem:[%s0 + $0x50] sm:$0xff]
    %v51 = vld [vmem:[%s0 + $0x58] sm:$0xff]
    %v52 = vld [vmem:[%s0 + $0x60] sm:$0xff]
    %v53 = vld [vmem:[%s0 + $0x68] sm:$0xff]
    %v54 = vld [vmem:[%s0 + $0x70] sm:$0xff]
    %v55 = vld [vmem:[%s0 + $0x78] sm:$0xff]
    %v56 = vld [vmem:[%s1] sm:$0xf]
    %v57 = vld [vmem:[%s1 + $0x4] sm:$0xf]
    %v58 = vld [vmem:[%s1 + $0x8] sm:$0xf]
    %v59 = vld [vmem:[%s1 + $0xc] sm:$0xf]
    %v60 = vld [vmem:[%s1 + $0x10] sm:$0xf]
    %v61 = vld [vmem:[%s1 + $0x14] sm:$0xf]
    %v62 = vld [vmem:[%s1 + $0x18] sm:$0xf]
    %v63 = vld [vmem:[%s1 + $0x1c] sm:$0xf]
    %v64 = vld [vmem:[%s1 + $0x20] sm:$0xf]
    %v65 = vld [vmem:[%s1 + $0x24] sm:$0xf]
    %v66 = vld [vmem:[%s1 + $0x28] sm:$0xf]
    %v67 = vld [vmem:[%s1 + $0x2c] sm:$0xf]
    %v68 = vld [vmem:[%s1 + $0x30] sm:$0xf]
    %v69 = vld [vmem:[%s1 + $0x34] sm:$0xf]
    %v70 = vld [vmem:[%s1 + $0x38] sm:$0xf]
    %v71 = vld [vmem:[%s1 + $0x3c] sm:$0xf]
    %v72 = vld [vmem:[%s1 + $0x40] sm:$0xf]
    %v73 = vld [vmem:[%s1 + $0x44] sm:$0xf]
    %v74 = vld [vmem:[%s1 + $0x48] sm:$0xf]
    %v75 = vld [vmem:[%s1 + $0x4c] sm:$0xf]
    %v76 = vld [vmem:[%s1 + $0x50] sm:$0xf]
    %v77 = vld [vmem:[%s1 + $0x54] sm:$0xf]
    %v78 = vld [vmem:[%s1 + $0x58] sm:$0xf]
    %v79 = vld [vmem:[%s1 + $0x5c] sm:$0xf]
    %v80 = vld [vmem:[%s1 + $0x60] sm:$0xf]
    %v81 = vld [vmem:[%s1 + $0x64] sm:$0xf]
    %v82 = vld [vmem:[%s1 + $0x68] sm:$0xf]
    %v83 = vld [vmem:[%s1 + $0x6c] sm:$0xf]
    %v84 = vld [vmem:[%s1 + $0x70] sm:$0xf]
    %v85 = vld [vmem:[%s1 + $0x74] sm:$0xf]
    %v86 = vld [vmem:[%s1 + $0x78] sm:$0xf]
    %v87 = vld [vmem:[%s1 + $0x7c] sm:$0xf]
    %v88 = vld [vmem:[%s2] sm:$0x1]
    %v90 = vlaneseq
    %v91 = vshrl.u32 %v90, 7
    %v92 = vsub.s32 0, %v91
    %v93 = vrot.slane %v88, %v92
    %v111 = vunpack.c.l.b16 %v40
    %v112 = vunpack.c.h.b16 %v40
    %v113 = vunpack.c.l.b16 %v41
    %v114 = vunpack.c.h.b16 %v41
    %v115 = vunpack.c.l.b16 %v42
    %v116 = vunpack.c.h.b16 %v42
    %v117 = vunpack.c.l.b16 %v43
    %v118 = vunpack.c.h.b16 %v43
    %v119 = vunpack.c.l.b16 %v44
    %v120 = vunpack.c.h.b16 %v44
    %v121 = vunpack.c.l.b16 %v45
    %v122 = vunpack.c.h.b16 %v45
    %v123 = vunpack.c.l.b16 %v46
    %v124 = vunpack.c.h.b16 %v46
    %v125 = vunpack.c.l.b16 %v47
    %v126 = vunpack.c.h.b16 %v47
    %v127 = vunpack.c.l.b16 %v48
    %v128 = vunpack.c.h.b16 %v48
    %v129 = vunpack.c.l.b16 %v49
    %v130 = vunpack.c.h.b16 %v49
    %v131 = vunpack.c.l.b16 %v50
    %v132 = vunpack.c.h.b16 %v50
    %v133 = vunpack.c.l.b16 %v51
    %v134 = vunpack.c.h.b16 %v51
    %v135 = vunpack.c.l.b16 %v52
    %v136 = vunpack.c.h.b16 %v52
    %v137 = vunpack.c.l.b16 %v53
    %v138 = vunpack.c.h.b16 %v53
    %v139 = vunpack.c.l.b16 %v54
    %v140 = vunpack.c.h.b16 %v54
    %v141 = vunpack.c.l.b16 %v55
    %v142 = vunpack.c.h.b16 %v55
    %v143 = vpack.c.b16 %v113, %v111
    %v144 = vpack.c.b16 %v114, %v112
    %v145 = vpack.c.b16 %v117, %v115
    %v146 = vpack.c.b16 %v118, %v116
    %v147 = vpack.c.b16 %v121, %v119
    %v148 = vpack.c.b16 %v122, %v120
    %v149 = vpack.c.b16 %v125, %v123
    %v150 = vpack.c.b16 %v126, %v124
    %v151 = vpack.c.b16 %v129, %v127
    %v152 = vpack.c.b16 %v130, %v128
    %v153 = vpack.c.b16 %v133, %v131
    %v154 = vpack.c.b16 %v134, %v132
    %v155 = vpack.c.b16 %v137, %v135
    %v156 = vpack.c.b16 %v138, %v136
    %v157 = vpack.c.b16 %v141, %v139
    %v158 = vpack.c.b16 %v142, %v140
    %v207 = vunpack.c.l.b16 %v56
    %v208 = vunpack.c.l.b16 %v57
    %v209 = vunpack.c.l.b16 %v58
    %v210 = vunpack.c.l.b16 %v59
    %v211 = vunpack.c.l.b16 %v60
    %v212 = vunpack.c.l.b16 %v61
    %v213 = vunpack.c.l.b16 %v62
    %v214 = vunpack.c.l.b16 %v63
    %v215 = vunpack.c.l.b16 %v64
    %v216 = vunpack.c.l.b16 %v65
    %v217 = vunpack.c.l.b16 %v66
    %v218 = vunpack.c.l.b16 %v67
    %v219 = vunpack.c.l.b16 %v68
    %v220 = vunpack.c.l.b16 %v69
    %v221 = vunpack.c.l.b16 %v70
    %v222 = vunpack.c.l.b16 %v71
    %v223 = vunpack.c.l.b16 %v72
    %v224 = vunpack.c.l.b16 %v73
    %v225 = vunpack.c.l.b16 %v74
    %v226 = vunpack.c.l.b16 %v75
    %v227 = vunpack.c.l.b16 %v76
    %v228 = vunpack.c.l.b16 %v77
    %v229 = vunpack.c.l.b16 %v78
    %v230 = vunpack.c.l.b16 %v79
    %v231 = vunpack.c.l.b16 %v80
    %v232 = vunpack.c.l.b16 %v81
    %v233 = vunpack.c.l.b16 %v82
    %v234 = vunpack.c.l.b16 %v83
    %v235 = vunpack.c.l.b16 %v84
    %v236 = vunpack.c.l.b16 %v85
    %v237 = vunpack.c.l.b16 %v86
    %v238 = vunpack.c.l.b16 %v87
    %v239 = vpack.c.b16 %v208, %v207
    %v240 = vpack.c.b16 %v210, %v209
    %v241 = vpack.c.b16 %v212, %v211
    %v242 = vpack.c.b16 %v214, %v213
    %v243 = vpack.c.b16 %v216, %v215
    %v244 = vpack.c.b16 %v218, %v217
    %v245 = vpack.c.b16 %v220, %v219
    %v246 = vpack.c.b16 %v222, %v221
    %v247 = vpack.c.b16 %v224, %v223
    %v248 = vpack.c.b16 %v226, %v225
    %v249 = vpack.c.b16 %v228, %v227
    %v250 = vpack.c.b16 %v230, %v229
    %v251 = vpack.c.b16 %v232, %v231
    %v252 = vpack.c.b16 %v234, %v233
    %v253 = vpack.c.b16 %v236, %v235
    %v254 = vpack.c.b16 %v238, %v237
    %271 = vmatprep.subr.bf16.mxu0 0
    %272 = vmatpush1.bf16.msra.mxu0 %v239
    %273 = vmatprep.subr.bf16.mxu0 0
    %274 = vmatpush1.bf16.msra.mxu0 %v240
    %275 = vmatprep.subr.bf16.mxu0 0
    %276 = vmatpush1.bf16.msra.mxu0 %v241
    %277 = vmatprep.subr.bf16.mxu0 0
    %278 = vmatpush1.bf16.msra.mxu0 %v242
    %279 = vmatprep.subr.bf16.mxu0 0
    %280 = vmatpush1.bf16.msra.mxu0 %v243
    %281 = vmatprep.subr.bf16.mxu0 0
    %282 = vmatpush1.bf16.msra.mxu0 %v244
    %283 = vmatprep.subr.bf16.mxu0 0
    %284 = vmatpush1.bf16.msra.mxu0 %v245
    %285 = vmatprep.subr.bf16.mxu0 0
    %286 = vmatpush1.bf16.msra.mxu0 %v246
    %287 = vmatprep.subr.bf16.mxu0 0
    %288 = vmatpush1.bf16.msra.mxu0 %v247
    %289 = vmatprep.subr.bf16.mxu0 0
    %290 = vmatpush1.bf16.msra.mxu0 %v248
    %291 = vmatprep.subr.bf16.mxu0 0
    %292 = vmatpush1.bf16.msra.mxu0 %v249
    %293 = vmatprep.subr.bf16.mxu0 0
    %294 = vmatpush1.bf16.msra.mxu0 %v250
    %295 = vmatprep.subr.bf16.mxu0 0
    %296 = vmatpush1.bf16.msra.mxu0 %v251
    %297 = vmatprep.subr.bf16.mxu0 0
    %298 = vmatpush1.bf16.msra.mxu0 %v252
    %299 = vmatprep.subr.bf16.mxu0 0
    %300 = vmatpush1.bf16.msra.mxu0 %v253
    %301 = vmatprep.subr.bf16.mxu0 0
    %302 = vmatpush1.bf16.msra.mxu0 %v254
    %303 = vmatprep.mubr.bf16.mxu0 %v144
    %304 = vmatmul.mubr.bf16.gmra.mrb[0].mxu0 %v143
    %v305 = vpop.f32.mrb[0].mxu0
    %v306 = vadd.f32 %v93, %v305
    %v307 = vpop.f32.mrb[0].mxu0
    %v308 = vpop.f32.mrb[0].mxu0
    %v309 = vadd.f32 %v93, %v308
    %v310 = vpop.f32.mrb[0].mxu0
    %311 = vmatprep.mubr.bf16.mxu0 %v146
    %312 = vmatmul.mubr.bf16.gmra.mrb[0].mxu0 %v145
    %v313 = vpop.f32.mrb[0].mxu0
    %v314 = vadd.f32 %v93, %v313
    %v315 = vpop.f32.mrb[0].mxu0
    %v316 = vpop.f32.mrb[0].mxu0
    %v317 = vadd.f32 %v93, %v316
    %v318 = vpop.f32.mrb[0].mxu0
    %319 = vmatprep.mubr.bf16.mxu0 %v148
    %320 = vmatmul.mubr.bf16.gmra.mrb[0].mxu0 %v147
    %v321 = vpop.f32.mrb[0].mxu0
    %v322 = vadd.f32 %v93, %v321
    %v323 = vpop.f32.mrb[0].mxu0
    %v324 = vpop.f32.mrb[0].mxu0
    %v325 = vadd.f32 %v93, %v324
    %v326 = vpop.f32.mrb[0].mxu0
    %327 = vmatprep.mubr.bf16.mxu0 %v150
    %328 = vmatmul.mubr.bf16.gmra.mrb[0].mxu0 %v149
    %v329 = vpop.f32.mrb[0].mxu0
    %v330 = vadd.f32 %v93, %v329
    %v331 = vpop.f32.mrb[0].mxu0
    %v332 = vpop.f32.mrb[0].mxu0
    %v333 = vadd.f32 %v93, %v332
    %v334 = vpop.f32.mrb[0].mxu0
    %335 = vmatprep.mubr.bf16.mxu0 %v152
    %336 = vmatmul.mubr.bf16.gmra.mrb[0].mxu0 %v151
    %v337 = vpop.f32.mrb[0].mxu0
    %v338 = vadd.f32 %v93, %v337
    %v339 = vpop.f32.mrb[0].mxu0
    %v340 = vpop.f32.mrb[0].mxu0
    %v341 = vadd.f32 %v93, %v340
    %v342 = vpop.f32.mrb[0].mxu0
    %343 = vmatprep.mubr.bf16.mxu0 %v154
    %344 = vmatmul.mubr.bf16.gmra.mrb[0].mxu0 %v153
    %v345 = vpop.f32.mrb[0].mxu0
    %v346 = vadd.f32 %v93, %v345
    %v347 = vpop.f32.mrb[0].mxu0
    %v348 = vpop.f32.mrb[0].mxu0
    %v349 = vadd.f32 %v93, %v348
    %v350 = vpop.f32.mrb[0].mxu0
    %351 = vmatprep.mubr.bf16.mxu0 %v156
    %352 = vmatmul.mubr.bf16.gmra.mrb[0].mxu0 %v155
    %v353 = vpop.f32.mrb[0].mxu0
    %v354 = vadd.f32 %v93, %v353
    %v355 = vpop.f32.mrb[0].mxu0
    %v356 = vpop.f32.mrb[0].mxu0
    %v357 = vadd.f32 %v93, %v356
    %v358 = vpop.f32.mrb[0].mxu0
    %359 = vmatprep.mubr.bf16.mxu0 %v158
    %360 = vmatmul.mubr.bf16.gmra.mrb[0].mxu0 %v157
    %v361 = vpop.f32.mrb[0].mxu0
    %v362 = vadd.f32 %v93, %v361
    %v363 = vpop.f32.mrb[0].mxu0
    %v364 = vpop.f32.mrb[0].mxu0
    %v365 = vadd.f32 %v93, %v364
    %v366 = vpop.f32.mrb[0].mxu0
    %367 = vdwg.mxu0
    %v368 = vmax.f32 %v306, 0.0
    %v369 = vmax.f32 %v309, 0.0
    %v370 = vmax.f32 %v314, 0.0
    %v371 = vmax.f32 %v317, 0.0
    %v372 = vmax.f32 %v322, 0.0
    %v373 = vmax.f32 %v325, 0.0
    %v374 = vmax.f32 %v330, 0.0
    %v375 = vmax.f32 %v333, 0.0
    %v376 = vmax.f32 %v338, 0.0
    %v377 = vmax.f32 %v341, 0.0
    %v378 = vmax.f32 %v346, 0.0
    %v379 = vmax.f32 %v349, 0.0
    %v380 = vmax.f32 %v354, 0.0
    %v381 = vmax.f32 %v357, 0.0
    %v382 = vmax.f32 %v362, 0.0
    %v383 = vmax.f32 %v365, 0.0
    %vm394 = vcmask 1045504
    %v395 = vrot.slane %v368, 2
    %v396 = vrot.slane %v369, 2
    %v397 = vsel %vm394, %v395, %v396
    %v398 = vrot.slane %v370, 2
    %v399 = vsel %vm394, %v396, %v398
    %v400 = vrot.slane %v371, 2
    %v401 = vsel %vm394, %v398, %v400
    %v402 = vrot.slane %v372, 2
    %v403 = vsel %vm394, %v400, %v402
    %v404 = vrot.slane %v373, 2
    %v405 = vsel %vm394, %v402, %v404
    %v406 = vrot.slane %v374, 2
    %v407 = vsel %vm394, %v404, %v406
    %v408 = vrot.slane %v375, 2
    %v409 = vsel %vm394, %v406, %v408
    %v410 = vrot.slane %v376, 2
    %v411 = vsel %vm394, %v408, %v410
    %v412 = vrot.slane %v377, 2
    %v413 = vsel %vm394, %v410, %v412
    %414 = vrot.lane.b32.xlu0 %v397, 32
    %v415 = vpop.permute.xlu0 %414
    %416 = vrot.lane.b32.xlu0 %v399, 32
    %v417 = vpop.permute.xlu0 %416
    %418 = vrot.lane.b32.xlu0 %v401, 32
    %v419 = vpop.permute.xlu0 %418
    %420 = vrot.lane.b32.xlu0 %v403, 32
    %v421 = vpop.permute.xlu0 %420
    %422 = vrot.lane.b32.xlu0 %v405, 32
    %v423 = vpop.permute.xlu0 %422
    %424 = vrot.lane.b32.xlu0 %v407, 32
    %v425 = vpop.permute.xlu0 %424
    %426 = vrot.lane.b32.xlu0 %v409, 32
    %v427 = vpop.permute.xlu0 %426
    %428 = vrot.lane.b32.xlu0 %v411, 32
    %v429 = vpop.permute.xlu0 %428
    %430 = vrot.lane.b32.xlu0 %v413, 32
    %v431 = vpop.permute.xlu0 %430
    %432 = vrot.lane.b32.xlu0 %v412, 32
    %v433 = vpop.permute.xlu0 %432
    %vm444 = vcmask 1043456
    %v445 = vrot.slane %v368, 4
    %v446 = vrot.slane %v369, 4
    %v447 = vsel %vm444, %v445, %v446
    %v448 = vrot.slane %v370, 4
    %v449 = vsel %vm444, %v446, %v448
    %v450 = vrot.slane %v371, 4
    %v451 = vsel %vm444, %v448, %v450
    %v452 = vrot.slane %v372, 4
    %v453 = vsel %vm444, %v450, %v452
    %v454 = vrot.slane %v373, 4
    %v455 = vsel %vm444, %v452, %v454
    %v456 = vrot.slane %v374, 4
    %v457 = vsel %vm444, %v454, %v456
    %v458 = vrot.slane %v375, 4
    %v459 = vsel %vm444, %v456, %v458
    %v460 = vrot.slane %v376, 4
    %v461 = vsel %vm444, %v458, %v460
    %v462 = vrot.slane %v377, 4
    %v463 = vsel %vm444, %v460, %v462
    %464 = vrot.lane.b32.xlu0 %v447, 64
    %v465 = vpop.permute.xlu0 %464
    %466 = vrot.lane.b32.xlu0 %v449, 64
    %v467 = vpop.permute.xlu0 %466
    %468 = vrot.lane.b32.xlu0 %v451, 64
    %v469 = vpop.permute.xlu0 %468
    %470 = vrot.lane.b32.xlu0 %v453, 64
    %v471 = vpop.permute.xlu0 %470
    %472 = vrot.lane.b32.xlu0 %v455, 64
    %v473 = vpop.permute.xlu0 %472
    %474 = vrot.lane.b32.xlu0 %v457, 64
    %v475 = vpop.permute.xlu0 %474
    %476 = vrot.lane.b32.xlu0 %v459, 64
    %v477 = vpop.permute.xlu0 %476
    %478 = vrot.lane.b32.xlu0 %v461, 64
    %v479 = vpop.permute.xlu0 %478
    %480 = vrot.lane.b32.xlu0 %v463, 64
    %v481 = vpop.permute.xlu0 %480
    %482 = vrot.lane.b32.xlu0 %v462, 64
    %v483 = vpop.permute.xlu0 %482
    %vm494 = vcmask 1041408
    %v495 = vrot.slane %v368, 6
    %v496 = vrot.slane %v369, 6
    %v497 = vsel %vm494, %v495, %v496
    %v498 = vrot.slane %v370, 6
    %v499 = vsel %vm494, %v496, %v498
    %v500 = vrot.slane %v371, 6
    %v501 = vsel %vm494, %v498, %v500
    %v502 = vrot.slane %v372, 6
    %v503 = vsel %vm494, %v500, %v502
    %v504 = vrot.slane %v373, 6
    %v505 = vsel %vm494, %v502, %v504
    %v506 = vrot.slane %v374, 6
    %v507 = vsel %vm494, %v504, %v506
    %v508 = vrot.slane %v375, 6
    %v509 = vsel %vm494, %v506, %v508
    %v510 = vrot.slane %v376, 6
    %v511 = vsel %vm494, %v508, %v510
    %v512 = vrot.slane %v377, 6
    %v513 = vsel %vm494, %v510, %v512
    %514 = vrot.lane.b32.xlu0 %v497, 96
    %v515 = vpop.permute.xlu0 %514
    %516 = vrot.lane.b32.xlu0 %v499, 96
    %v517 = vpop.permute.xlu0 %516
    %518 = vrot.lane.b32.xlu0 %v501, 96
    %v519 = vpop.permute.xlu0 %518
    %520 = vrot.lane.b32.xlu0 %v503, 96
    %v521 = vpop.permute.xlu0 %520
    %522 = vrot.lane.b32.xlu0 %v505, 96
    %v523 = vpop.permute.xlu0 %522
    %524 = vrot.lane.b32.xlu0 %v507, 96
    %v525 = vpop.permute.xlu0 %524
    %526 = vrot.lane.b32.xlu0 %v509, 96
    %v527 = vpop.permute.xlu0 %526
    %528 = vrot.lane.b32.xlu0 %v511, 96
    %v529 = vpop.permute.xlu0 %528
    %530 = vrot.lane.b32.xlu0 %v513, 96
    %v531 = vpop.permute.xlu0 %530
    %532 = vrot.lane.b32.xlu0 %v512, 96
    %v533 = vpop.permute.xlu0 %532
    %v546 = vrot.slane %v378, 2
    %v547 = vsel %vm394, %v412, %v546
    %v548 = vrot.slane %v379, 2
    %v549 = vsel %vm394, %v546, %v548
    %550 = vrot.lane.b32.xlu0 %v547, 32
    %v551 = vpop.permute.xlu0 %550
    %552 = vrot.lane.b32.xlu0 %v549, 32
    %v553 = vpop.permute.xlu0 %552
    %554 = vrot.lane.b32.xlu0 %v548, 32
    %v555 = vpop.permute.xlu0 %554
    %v559 = vrot.slane %v378, 4
    %v560 = vsel %vm444, %v462, %v559
    %v561 = vrot.slane %v379, 4
    %v562 = vsel %vm444, %v559, %v561
    %563 = vrot.lane.b32.xlu0 %v560, 64
    %v564 = vpop.permute.xlu0 %563
    %565 = vrot.lane.b32.xlu0 %v562, 64
    %v566 = vpop.permute.xlu0 %565
    %567 = vrot.lane.b32.xlu0 %v561, 64
    %v568 = vpop.permute.xlu0 %567
    %v572 = vrot.slane %v378, 6
    %v573 = vsel %vm494, %v512, %v572
    %v574 = vrot.slane %v379, 6
    %v575 = vsel %vm494, %v572, %v574
    %576 = vrot.lane.b32.xlu0 %v573, 96
    %v577 = vpop.permute.xlu0 %576
    %578 = vrot.lane.b32.xlu0 %v575, 96
    %v579 = vpop.permute.xlu0 %578
    %580 = vrot.lane.b32.xlu0 %v574, 96
    %v581 = vpop.permute.xlu0 %580
    %v587 = vrot.slane %v380, 2
    %v588 = vsel %vm394, %v548, %v587
    %v589 = vrot.slane %v381, 2
    %v590 = vsel %vm394, %v587, %v589
    %591 = vrot.lane.b32.xlu0 %v588, 32
    %v592 = vpop.permute.xlu0 %591
    %593 = vrot.lane.b32.xlu0 %v590, 32
    %v594 = vpop.permute.xlu0 %593
    %595 = vrot.lane.b32.xlu0 %v589, 32
    %v596 = vpop.permute.xlu0 %595
    %v600 = vrot.slane %v380, 4
    %v601 = vsel %vm444, %v561, %v600
    %v602 = vrot.slane %v381, 4
    %v603 = vsel %vm444, %v600, %v602
    %604 = vrot.lane.b32.xlu0 %v601, 64
    %v605 = vpop.permute.xlu0 %604
    %606 = vrot.lane.b32.xlu0 %v603, 64
    %v607 = vpop.permute.xlu0 %606
    %608 = vrot.lane.b32.xlu0 %v602, 64
    %v609 = vpop.permute.xlu0 %608
    %v613 = vrot.slane %v380, 6
    %v614 = vsel %vm494, %v574, %v613
    %v615 = vrot.slane %v381, 6
    %v616 = vsel %vm494, %v613, %v615
    %617 = vrot.lane.b32.xlu0 %v614, 96
    %v618 = vpop.permute.xlu0 %617
    %619 = vrot.lane.b32.xlu0 %v616, 96
    %v620 = vpop.permute.xlu0 %619
    %621 = vrot.lane.b32.xlu0 %v615, 96
    %v622 = vpop.permute.xlu0 %621
    %v628 = vrot.slane %v382, 2
    %v629 = vsel %vm394, %v589, %v628
    %v630 = vrot.slane %v383, 2
    %v631 = vsel %vm394, %v628, %v630
    %632 = vrot.lane.b32.xlu0 %v629, 32
    %v633 = vpop.permute.xlu0 %632
    %634 = vrot.lane.b32.xlu0 %v631, 32
    %v635 = vpop.permute.xlu0 %634
    %636 = vrot.lane.b32.xlu0 %v630, 32
    %v637 = vpop.permute.xlu0 %636
    %v641 = vrot.slane %v382, 4
    %v642 = vsel %vm444, %v602, %v641
    %v643 = vrot.slane %v383, 4
    %v644 = vsel %vm444, %v641, %v643
    %645 = vrot.lane.b32.xlu0 %v642, 64
    %v646 = vpop.permute.xlu0 %645
    %647 = vrot.lane.b32.xlu0 %v644, 64
    %v648 = vpop.permute.xlu0 %647
    %649 = vrot.lane.b32.xlu0 %v643, 64
    %v650 = vpop.permute.xlu0 %649
    %v654 = vrot.slane %v382, 6
    %v655 = vsel %vm494, %v615, %v654
    %v656 = vrot.slane %v383, 6
    %v657 = vsel %vm494, %v654, %v656
    %658 = vrot.lane.b32.xlu0 %v655, 96
    %v659 = vpop.permute.xlu0 %658
    %660 = vrot.lane.b32.xlu0 %v657, 96
    %v661 = vpop.permute.xlu0 %660
    %662 = vrot.lane.b32.xlu0 %v656, 96
    %v663 = vpop.permute.xlu0 %662
    %vm667 = vcmask 261120
    %v668 = vsel %vm667, %v368, %v415
    %v669 = vsel %vm667, %v369, %v417
    %v670 = vsel %vm667, %v370, %v419
    %v671 = vsel %vm667, %v371, %v421
    %v672 = vsel %vm667, %v372, %v423
    %v673 = vsel %vm667, %v373, %v425
    %v674 = vsel %vm667, %v374, %v427
    %v675 = vsel %vm667, %v375, %v429
    %v676 = vsel %vm667, %v376, %v431
    %v677 = vsel %vm667, %v377, %v433
    %vm678 = vcmask 523264
    %v679 = vsel %vm678, %v668, %v465
    %v680 = vsel %vm678, %v669, %v467
    %v681 = vsel %vm678, %v670, %v469
    %v682 = vsel %vm678, %v671, %v471
    %v683 = vsel %vm678, %v672, %v473
    %v684 = vsel %vm678, %v673, %v475
    %v685 = vsel %vm678, %v674, %v477
    %v686 = vsel %vm678, %v675, %v479
    %v687 = vsel %vm678, %v676, %v481
    %v688 = vsel %vm678, %v677, %v483
    %vm689 = vcmask 785408
    %v690 = vsel %vm689, %v679, %v515
    %v691 = vsel %vm689, %v680, %v517
    %v692 = vsel %vm689, %v681, %v519
    %v693 = vsel %vm689, %v682, %v521
    %v694 = vsel %vm689, %v683, %v523
    %v695 = vsel %vm689, %v684, %v525
    %v696 = vsel %vm689, %v685, %v527
    %v697 = vsel %vm689, %v686, %v529
    %v698 = vsel %vm689, %v687, %v531
    %v699 = vsel %vm689, %v688, %v533
    %v700 = vsel %vm667, %v377, %v551
    %v701 = vsel %vm667, %v378, %v553
    %v702 = vsel %vm667, %v379, %v555
    %v703 = vsel %vm678, %v700, %v564
    %v704 = vsel %vm678, %v701, %v566
    %v705 = vsel %vm678, %v702, %v568
    %v706 = vsel %vm689, %v703, %v577
    %v707 = vsel %vm689, %v704, %v579
    %v708 = vsel %vm689, %v705, %v581
    %v709 = vsel %vm667, %v379, %v592
    %v710 = vsel %vm667, %v380, %v594
    %v711 = vsel %vm667, %v381, %v596
    %v712 = vsel %vm678, %v709, %v605
    %v713 = vsel %vm678, %v710, %v607
    %v714 = vsel %vm678, %v711, %v609
    %v715 = vsel %vm689, %v712, %v618
    %v716 = vsel %vm689, %v713, %v620
    %v717 = vsel %vm689, %v714, %v622
    %v718 = vsel %vm667, %v381, %v633
    %v719 = vsel %vm667, %v382, %v635
    %v720 = vsel %vm667, %v383, %v637
    %v721 = vsel %vm678, %v718, %v646
    %v722 = vsel %vm678, %v719, %v648
    %v723 = vsel %vm678, %v720, %v650
    %v724 = vsel %vm689, %v721, %v659
    %v725 = vsel %vm689, %v722, %v661
    %v726 = vsel %vm689, %v723, %v663
    %v727 = vpack.c.bf16 %v691, %v690
    %v728 = vpack.c.bf16 %v693, %v692
    %v729 = vpack.c.bf16 %v695, %v694
    %v730 = vpack.c.bf16 %v697, %v696
    %v731 = vpack.c.bf16 %v706, %v698
    %v732 = vpack.c.bf16 %v715, %v707
    %v733 = vpack.c.bf16 %v724, %v716
    %v734 = vpack.c.bf16 %v699, %v698
    %v735 = vpack.c.bf16 %v708, %v707
    %v736 = vpack.c.bf16 %v717, %v716
    %v737 = vpack.c.bf16 %v726, %v725
    %v738 = vld [vmem:[%s3] sm:$0xf]
    %v739 = vld [vmem:[%s3 + $0x4] sm:$0xf]
    %v740 = vld [vmem:[%s3 + $0x8] sm:$0xf]
    %v741 = vld [vmem:[%s3 + $0xc] sm:$0xf]
    %v742 = vld [vmem:[%s3 + $0x10] sm:$0xf]
    %v743 = vld [vmem:[%s3 + $0x14] sm:$0xf]
    %v744 = vld [vmem:[%s3 + $0x18] sm:$0xf]
    %v745 = vld [vmem:[%s3 + $0x1c] sm:$0xf]
    %v746 = vld [vmem:[%s3 + $0x20] sm:$0xf]
    %v747 = vld [vmem:[%s3 + $0x24] sm:$0xf]
    %v748 = vld [vmem:[%s3 + $0x28] sm:$0xf]
    %v749 = vld [vmem:[%s3 + $0x2c] sm:$0xf]
    %v750 = vld [vmem:[%s3 + $0x30] sm:$0xf]
    %v751 = vld [vmem:[%s3 + $0x34] sm:$0xf]
    %v752 = vld [vmem:[%s3 + $0x38] sm:$0xf]
    %v753 = vld [vmem:[%s3 + $0x3c] sm:$0xf]
    %v754 = vld [vmem:[%s3 + $0x40] sm:$0xf]
    %v755 = vld [vmem:[%s3 + $0x44] sm:$0xf]
    %v756 = vld [vmem:[%s3 + $0x48] sm:$0xf]
    %v757 = vld [vmem:[%s3 + $0x4c] sm:$0xf]
    %v758 = vld [vmem:[%s3 + $0x50] sm:$0xf]
    %v759 = vld [vmem:[%s3 + $0x54] sm:$0xf]
    %v760 = vld [vmem:[%s3 + $0x58] sm:$0xf]
    %v761 = vld [vmem:[%s3 + $0x5c] sm:$0xf]
    %v762 = vld [vmem:[%s3 + $0x60] sm:$0xf]
    %v763 = vld [vmem:[%s3 + $0x64] sm:$0xf]
    %v764 = vld [vmem:[%s3 + $0x68] sm:$0xf]
    %v765 = vld [vmem:[%s3 + $0x6c] sm:$0xf]
    %v766 = vld [vmem:[%s3 + $0x70] sm:$0xf]
    %v767 = vld [vmem:[%s3 + $0x74] sm:$0xf]
    %v768 = vld [vmem:[%s3 + $0x78] sm:$0xf]
    %v769 = vld [vmem:[%s3 + $0x7c] sm:$0xf]
    %v770 = vld [vmem:[%s3 + $0x80] sm:$0xf]
    %v771 = vld [vmem:[%s3 + $0x84] sm:$0xf]
    %v772 = vld [vmem:[%s3 + $0x88] sm:$0xf]
    %v773 = vld [vmem:[%s3 + $0x8c] sm:$0xf]
    %v774 = vld [vmem:[%s3 + $0x90] sm:$0xf]
    %v775 = vld [vmem:[%s3 + $0x94] sm:$0xf]
    %v776 = vld [vmem:[%s3 + $0x98] sm:$0xf]
    %v777 = vld [vmem:[%s3 + $0x9c] sm:$0xf]
    %v778 = vld [vmem:[%s3 + $0xa0] sm:$0xf]
    %v779 = vld [vmem:[%s3 + $0xa4] sm:$0xf]
    %v780 = vld [vmem:[%s3 + $0xa8] sm:$0xf]
    %v781 = vld [vmem:[%s3 + $0xac] sm:$0xf]
    %v782 = vld [vmem:[%s3 + $0xb0] sm:$0xf]
    %v783 = vld [vmem:[%s3 + $0xb4] sm:$0xf]
    %v784 = vld [vmem:[%s3 + $0xb8] sm:$0xf]
    %v785 = vld [vmem:[%s3 + $0xbc] sm:$0xf]
    %v786 = vld [vmem:[%s3 + $0xc0] sm:$0xf]
    %v787 = vld [vmem:[%s3 + $0xc4] sm:$0xf]
    %v788 = vld [vmem:[%s3 + $0xc8] sm:$0xf]
    %v789 = vld [vmem:[%s3 + $0xcc] sm:$0xf]
    %v790 = vld [vmem:[%s3 + $0xd0] sm:$0xf]
    %v791 = vld [vmem:[%s3 + $0xd4] sm:$0xf]
    %v792 = vld [vmem:[%s3 + $0xd8] sm:$0xf]
    %v793 = vld [vmem:[%s3 + $0xdc] sm:$0xf]
    %v794 = vld [vmem:[%s3 + $0xe0] sm:$0xf]
    %v795 = vld [vmem:[%s3 + $0xe4] sm:$0xf]
    %v796 = vld [vmem:[%s3 + $0xe8] sm:$0xf]
    %v797 = vld [vmem:[%s3 + $0xec] sm:$0xf]
    %v798 = vld [vmem:[%s3 + $0xf0] sm:$0xf]
    %v799 = vld [vmem:[%s3 + $0xf4] sm:$0xf]
    %v800 = vld [vmem:[%s3 + $0xf8] sm:$0xf]
    %v801 = vld [vmem:[%s3 + $0xfc] sm:$0xf]
    %v802 = vld [vmem:[%s4] sm:$0x1]
    %v804 = vlaneseq
    %v805 = vshrl.u32 %v804, 7
    %v806 = vsub.s32 0, %v805
    %v807 = vrot.slane %v802, %v806
    %v873 = vunpack.c.l.b16 %v738
    %v874 = vunpack.c.l.b16 %v739
    %v875 = vunpack.c.l.b16 %v740
    %v876 = vunpack.c.l.b16 %v741
    %v877 = vunpack.c.l.b16 %v742
    %v878 = vunpack.c.l.b16 %v743
    %v879 = vunpack.c.l.b16 %v744
    %v880 = vunpack.c.l.b16 %v745
    %v881 = vunpack.c.l.b16 %v746
    %v882 = vunpack.c.l.b16 %v747
    %v883 = vunpack.c.l.b16 %v748
    %v884 = vunpack.c.l.b16 %v749
    %v885 = vunpack.c.l.b16 %v750
    %v886 = vunpack.c.l.b16 %v751
    %v887 = vunpack.c.l.b16 %v752
    %v888 = vunpack.c.l.b16 %v753
    %v889 = vunpack.c.l.b16 %v754
    %v890 = vunpack.c.l.b16 %v755
    %v891 = vunpack.c.l.b16 %v756
    %v892 = vunpack.c.l.b16 %v757
    %v893 = vunpack.c.l.b16 %v758
    %v894 = vunpack.c.l.b16 %v759
    %v895 = vunpack.c.l.b16 %v760
    %v896 = vunpack.c.l.b16 %v761
    %v897 = vunpack.c.l.b16 %v762
    %v898 = vunpack.c.l.b16 %v763
    %v899 = vunpack.c.l.b16 %v764
    %v900 = vunpack.c.l.b16 %v765
    %v901 = vunpack.c.l.b16 %v766
    %v902 = vunpack.c.l.b16 %v767
    %v903 = vunpack.c.l.b16 %v768
    %v904 = vunpack.c.l.b16 %v769
    %v905 = vunpack.c.l.b16 %v770
    %v906 = vunpack.c.l.b16 %v771
    %v907 = vunpack.c.l.b16 %v772
    %v908 = vunpack.c.l.b16 %v773
    %v909 = vunpack.c.l.b16 %v774
    %v910 = vunpack.c.l.b16 %v775
    %v911 = vunpack.c.l.b16 %v776
    %v912 = vunpack.c.l.b16 %v777
    %v913 = vunpack.c.l.b16 %v778
    %v914 = vunpack.c.l.b16 %v779
    %v915 = vunpack.c.l.b16 %v780
    %v916 = vunpack.c.l.b16 %v781
    %v917 = vunpack.c.l.b16 %v782
    %v918 = vunpack.c.l.b16 %v783
    %v919 = vunpack.c.l.b16 %v784
    %v920 = vunpack.c.l.b16 %v785
    %v921 = vunpack.c.l.b16 %v786
    %v922 = vunpack.c.l.b16 %v787
    %v923 = vunpack.c.l.b16 %v788
    %v924 = vunpack.c.l.b16 %v789
    %v925 = vunpack.c.l.b16 %v790
    %v926 = vunpack.c.l.b16 %v791
    %v927 = vunpack.c.l.b16 %v792
    %v928 = vunpack.c.l.b16 %v793
    %v929 = vunpack.c.l.b16 %v794
    %v930 = vunpack.c.l.b16 %v795
    %v931 = vunpack.c.l.b16 %v796
    %v932 = vunpack.c.l.b16 %v797
    %v933 = vunpack.c.l.b16 %v798
    %v934 = vunpack.c.l.b16 %v799
    %v935 = vunpack.c.l.b16 %v800
    %v936 = vunpack.c.l.b16 %v801
    %v937 = vpack.c.b16 %v874, %v873
    %v938 = vpack.c.b16 %v876, %v875
    %v939 = vpack.c.b16 %v878, %v877
    %v940 = vpack.c.b16 %v880, %v879
    %v941 = vpack.c.b16 %v882, %v881
    %v942 = vpack.c.b16 %v884, %v883
    %v943 = vpack.c.b16 %v886, %v885
    %v944 = vpack.c.b16 %v888, %v887
    %v945 = vpack.c.b16 %v890, %v889
    %v946 = vpack.c.b16 %v892, %v891
    %v947 = vpack.c.b16 %v894, %v893
    %v948 = vpack.c.b16 %v896, %v895
    %v949 = vpack.c.b16 %v898, %v897
    %v950 = vpack.c.b16 %v900, %v899
    %v951 = vpack.c.b16 %v902, %v901
    %v952 = vpack.c.b16 %v904, %v903
    %v953 = vpack.c.b16 %v906, %v905
    %v954 = vpack.c.b16 %v908, %v907
    %v955 = vpack.c.b16 %v910, %v909
    %v956 = vpack.c.b16 %v912, %v911
    %v957 = vpack.c.b16 %v914, %v913
    %v958 = vpack.c.b16 %v916, %v915
    %v959 = vpack.c.b16 %v918, %v917
    %v960 = vpack.c.b16 %v920, %v919
    %v961 = vpack.c.b16 %v922, %v921
    %v962 = vpack.c.b16 %v924, %v923
    %v963 = vpack.c.b16 %v926, %v925
    %v964 = vpack.c.b16 %v928, %v927
    %v965 = vpack.c.b16 %v930, %v929
    %v966 = vpack.c.b16 %v932, %v931
    %v967 = vpack.c.b16 %v934, %v933
    %v968 = vpack.c.b16 %v936, %v935
    %1001 = vmatprep.subr.bf16.mxu0 0
    %1002 = vmatpush1.bf16.msra.mxu0 %v937
    %1003 = vmatprep.subr.bf16.mxu0 0
    %1004 = vmatpush1.bf16.msra.mxu0 %v938
    %1005 = vmatprep.subr.bf16.mxu0 0
    %1006 = vmatpush1.bf16.msra.mxu0 %v939
    %1007 = vmatprep.subr.bf16.mxu0 0
    %1008 = vmatpush1.bf16.msra.mxu0 %v940
    %1009 = vmatprep.subr.bf16.mxu0 0
    %1010 = vmatpush1.bf16.msra.mxu0 %v941
    %1011 = vmatprep.subr.bf16.mxu0 0
    %1012 = vmatpush1.bf16.msra.mxu0 %v942
    %1013 = vmatprep.subr.bf16.mxu0 0
    %1014 = vmatpush1.bf16.msra.mxu0 %v943
    %1015 = vmatprep.subr.bf16.mxu0 0
    %1016 = vmatpush1.bf16.msra.mxu0 %v944
    %1017 = vmatprep.subr.bf16.mxu0 0
    %1018 = vmatpush1.bf16.msra.mxu0 %v945
    %1019 = vmatprep.subr.bf16.mxu0 0
    %1020 = vmatpush1.bf16.msra.mxu0 %v946
    %1021 = vmatprep.subr.bf16.mxu0 0
    %1022 = vmatpush1.bf16.msra.mxu0 %v947
    %1023 = vmatprep.subr.bf16.mxu0 0
    %1024 = vmatpush1.bf16.msra.mxu0 %v948
    %1025 = vmatprep.subr.bf16.mxu0 0
    %1026 = vmatpush1.bf16.msra.mxu0 %v949
    %1027 = vmatprep.subr.bf16.mxu0 0
    %1028 = vmatpush1.bf16.msra.mxu0 %v950
    %1029 = vmatprep.subr.bf16.mxu0 0
    %1030 = vmatpush1.bf16.msra.mxu0 %v951
    %1031 = vmatprep.subr.bf16.mxu0 0
    %1032 = vmatpush1.bf16.msra.mxu0 %v952
    %1033 = vmatprep.mubr.bf16.mxu0 %v728
    %1034 = vmatmul.mubr.bf16.gmra.mrb[0].mxu0 %v727
    %v1035 = vpop.f32.mrb[0].mxu0
    %v1036 = vadd.f32 %v807, %v1035
    %v1037 = vpop.f32.mrb[0].mxu0
    %v1038 = vpop.f32.mrb[0].mxu0
    %v1039 = vadd.f32 %v807, %v1038
    %v1040 = vpop.f32.mrb[0].mxu0
    %1041 = vmatprep.mubr.bf16.mxu0 %v729
    %1042 = vmatmul.mubr.bf16.gmra.mrb[0].mxu0 %v728
    %v1043 = vpop.f32.mrb[0].mxu0
    %v1044 = vpop.f32.mrb[0].mxu0
    %v1045 = vpop.f32.mrb[0].mxu0
    %v1046 = vpop.f32.mrb[0].mxu0
    %1047 = vmatprep.mubr.bf16.mxu0 %v730
    %1048 = vmatmul.mubr.bf16.gmra.mrb[0].mxu0 %v729
    %v1049 = vpop.f32.mrb[0].mxu0
    %v1050 = vadd.f32 %v807, %v1049
    %v1051 = vpop.f32.mrb[0].mxu0
    %v1052 = vpop.f32.mrb[0].mxu0
    %v1053 = vadd.f32 %v807, %v1052
    %v1054 = vpop.f32.mrb[0].mxu0
    %1055 = vmatprep.mubr.bf16.mxu0 %v731
    %1056 = vmatmul.mubr.bf16.gmra.mrb[0].mxu0 %v730
    %v1057 = vpop.f32.mrb[0].mxu0
    %v1058 = vpop.f32.mrb[0].mxu0
    %v1059 = vpop.f32.mrb[0].mxu0
    %v1060 = vpop.f32.mrb[0].mxu0
    %1061 = vmatprep.mubr.bf16.mxu0 %v735
    %1062 = vmatmul.mubr.bf16.gmra.mrb[0].mxu0 %v734
    %v1063 = vpop.f32.mrb[0].mxu0
    %v1064 = vadd.f32 %v807, %v1063
    %v1065 = vpop.f32.mrb[0].mxu0
    %v1066 = vpop.f32.mrb[0].mxu0
    %v1067 = vadd.f32 %v807, %v1066
    %v1068 = vpop.f32.mrb[0].mxu0
    %1069 = vdwg.mxu0
    %1070 = vmatprep.subr.bf16.mxu0 0
    %1071 = vmatpush1.bf16.msra.mxu0 %v953
    %1072 = vmatprep.subr.bf16.mxu0 0
    %1073 = vmatpush1.bf16.msra.mxu0 %v954
    %1074 = vmatprep.subr.bf16.mxu0 0
    %1075 = vmatpush1.bf16.msra.mxu0 %v955
    %1076 = vmatprep.subr.bf16.mxu0 0
    %1077 = vmatpush1.bf16.msra.mxu0 %v956
    %1078 = vmatprep.subr.bf16.mxu0 0
    %1079 = vmatpush1.bf16.msra.mxu0 %v957
    %1080 = vmatprep.subr.bf16.mxu0 0
    %1081 = vmatpush1.bf16.msra.mxu0 %v958
    %1082 = vmatprep.subr.bf16.mxu0 0
    %1083 = vmatpush1.bf16.msra.mxu0 %v959
    %1084 = vmatprep.subr.bf16.mxu0 0
    %1085 = vmatpush1.bf16.msra.mxu0 %v960
    %1086 = vmatprep.subr.bf16.mxu0 0
    %1087 = vmatpush1.bf16.msra.mxu0 %v961
    %1088 = vmatprep.subr.bf16.mxu0 0
    %1089 = vmatpush1.bf16.msra.mxu0 %v962
    %1090 = vmatprep.subr.bf16.mxu0 0
    %1091 = vmatpush1.bf16.msra.mxu0 %v963
    %1092 = vmatprep.subr.bf16.mxu0 0
    %1093 = vmatpush1.bf16.msra.mxu0 %v964
    %1094 = vmatprep.subr.bf16.mxu0 0
    %1095 = vmatpush1.bf16.msra.mxu0 %v965
    %1096 = vmatprep.subr.bf16.mxu0 0
    %1097 = vmatpush1.bf16.msra.mxu0 %v966
    %1098 = vmatprep.subr.bf16.mxu0 0
    %1099 = vmatpush1.bf16.msra.mxu0 %v967
    %1100 = vmatprep.subr.bf16.mxu0 0
    %1101 = vmatpush1.bf16.msra.mxu0 %v968
    %1102 = vmatprep.mubr.bf16.mxu0 %v730
    %1103 = vmatmul.mubr.bf16.gmra.mrb[0].mxu0 %v729
    %v1104 = vpop.f32.mrb[0].mxu0
    %v1105 = vadd.f32 %v1036, %v1104
    %v1106 = vpop.f32.mrb[0].mxu0
    %v1107 = vpop.f32.mrb[0].mxu0
    %v1108 = vadd.f32 %v1039, %v1107
    %v1109 = vpop.f32.mrb[0].mxu0
    %1110 = vmatprep.mubr.bf16.mxu0 %v731
    %1111 = vmatmul.mubr.bf16.gmra.mrb[0].mxu0 %v730
    %v1112 = vpop.f32.mrb[0].mxu0
    %v1113 = vpop.f32.mrb[0].mxu0
    %v1114 = vpop.f32.mrb[0].mxu0
    %v1115 = vpop.f32.mrb[0].mxu0
    %1116 = vmatprep.mubr.bf16.mxu0 %v732
    %1117 = vmatmul.mubr.bf16.gmra.mrb[0].mxu0 %v731
    %v1118 = vpop.f32.mrb[0].mxu0
    %v1119 = vadd.f32 %v1050, %v1118
    %v1120 = vpop.f32.mrb[0].mxu0
    %v1121 = vpop.f32.mrb[0].mxu0
    %v1122 = vadd.f32 %v1053, %v1121
    %v1123 = vpop.f32.mrb[0].mxu0
    %1124 = vmatprep.mubr.bf16.mxu0 %v733
    %1125 = vmatmul.mubr.bf16.gmra.mrb[0].mxu0 %v732
    %v1126 = vpop.f32.mrb[0].mxu0
    %v1127 = vpop.f32.mrb[0].mxu0
    %v1128 = vpop.f32.mrb[0].mxu0
    %v1129 = vpop.f32.mrb[0].mxu0
    %1130 = vmatprep.mubr.bf16.mxu0 %v737
    %1131 = vmatmul.mubr.bf16.gmra.mrb[0].mxu0 %v736
    %v1132 = vpop.f32.mrb[0].mxu0
    %v1133 = vadd.f32 %v1064, %v1132
    %v1134 = vpop.f32.mrb[0].mxu0
    %v1135 = vpop.f32.mrb[0].mxu0
    %v1136 = vadd.f32 %v1067, %v1135
    %v1137 = vpop.f32.mrb[0].mxu0
    %1138 = vdwg.mxu0
    %v1139 = vmax.f32 %v1105, 0.0
    %v1140 = vmax.f32 %v1108, 0.0
    %v1141 = vmax.f32 %v1119, 0.0
    %v1142 = vmax.f32 %v1122, 0.0
    %v1143 = vmax.f32 %v1133, 0.0
    %v1144 = vmax.f32 %v1136, 0.0
    %v1146 = vrot.slane %v1139, 4
    %1147 = vrot.lane.b32.xlu0 %v1146, 64
    %v1148 = vpop.permute.xlu0 %1147
    %1151 = vrot.lane.b32.xlu0 %v1141, 64
    %v1152 = vpop.permute.xlu0 %1151
    %v1154 = vrot.slane %v1141, 4
    %1157 = vrot.lane.b32.xlu0 %v1142, 64
    %v1158 = vpop.permute.xlu0 %1157
    %v1161 = vrot.slane %v1143, 4
    %1162 = vrot.lane.b32.xlu0 %v1161, 64
    %v1163 = vpop.permute.xlu0 %1162
    %v1165 = vsel %vm678, %v1139, %v1148
    %v1166 = vsel %vm678, %v1140, %v1152
    %v1167 = vsel %vm678, %v1154, %v1158
    %v1168 = vsel %vm678, %v1143, %v1163
    %v1169 = vpack.c.bf16 %v1165, %v1165
    %v1170 = vpack.c.bf16 %v1166, %v1166
    %v1171 = vpack.c.bf16 %v1167, %v1167
    %v1172 = vpack.c.bf16 %v1168, %v1168
    %v1173 = vpack.c.bf16 %v1144, %v1144
    %v1174 = vld [vmem:[%s5] sm:$0xf]
    %v1175 = vld [vmem:[%s5 + $0x4] sm:$0xf]
    %v1176 = vld [vmem:[%s5 + $0x8] sm:$0xf]
    %v1177 = vld [vmem:[%s5 + $0xc] sm:$0xf]
    %v1178 = vld [vmem:[%s5 + $0x10] sm:$0xf]
    %v1179 = vld [vmem:[%s5 + $0x14] sm:$0xf]
    %v1180 = vld [vmem:[%s5 + $0x18] sm:$0xf]
    %v1181 = vld [vmem:[%s5 + $0x1c] sm:$0xf]
    %v1182 = vld [vmem:[%s5 + $0x20] sm:$0xf]
    %v1183 = vld [vmem:[%s5 + $0x24] sm:$0xf]
    %v1184 = vld [vmem:[%s5 + $0x28] sm:$0xf]
    %v1185 = vld [vmem:[%s5 + $0x2c] sm:$0xf]
    %v1186 = vld [vmem:[%s5 + $0x30] sm:$0xf]
    %v1187 = vld [vmem:[%s5 + $0x34] sm:$0xf]
    %v1188 = vld [vmem:[%s5 + $0x38] sm:$0xf]
    %v1189 = vld [vmem:[%s5 + $0x3c] sm:$0xf]
    %v1190 = vld [vmem:[%s5 + $0x40] sm:$0xf]
    %v1191 = vld [vmem:[%s5 + $0x44] sm:$0xf]
    %v1192 = vld [vmem:[%s5 + $0x48] sm:$0xf]
    %v1193 = vld [vmem:[%s5 + $0x4c] sm:$0xf]
    %v1194 = vld [vmem:[%s5 + $0x50] sm:$0xf]
    %v1195 = vld [vmem:[%s5 + $0x54] sm:$0xf]
    %v1196 = vld [vmem:[%s5 + $0x58] sm:$0xf]
    %v1197 = vld [vmem:[%s5 + $0x5c] sm:$0xf]
    %v1198 = vld [vmem:[%s5 + $0x60] sm:$0xf]
    %v1199 = vld [vmem:[%s5 + $0x64] sm:$0xf]
    %v1200 = vld [vmem:[%s5 + $0x68] sm:$0xf]
    %v1201 = vld [vmem:[%s5 + $0x6c] sm:$0xf]
    %v1202 = vld [vmem:[%s5 + $0x70] sm:$0xf]
    %v1203 = vld [vmem:[%s5 + $0x74] sm:$0xf]
    %v1204 = vld [vmem:[%s5 + $0x78] sm:$0xf]
    %v1205 = vld [vmem:[%s5 + $0x7c] sm:$0xf]
    %v1206 = vld [vmem:[%s5 + $0x80] sm:$0xf]
    %v1207 = vld [vmem:[%s5 + $0x84] sm:$0xf]
    %v1208 = vld [vmem:[%s5 + $0x88] sm:$0xf]
    %v1209 = vld [vmem:[%s5 + $0x8c] sm:$0xf]
    %v1210 = vld [vmem:[%s5 + $0x90] sm:$0xf]
    %v1211 = vld [vmem:[%s5 + $0x94] sm:$0xf]
    %v1212 = vld [vmem:[%s5 + $0x98] sm:$0xf]
    %v1213 = vld [vmem:[%s5 + $0x9c] sm:$0xf]
    %v1214 = vld [vmem:[%s5 + $0xa0] sm:$0xf]
    %v1215 = vld [vmem:[%s5 + $0xa4] sm:$0xf]
    %v1216 = vld [vmem:[%s5 + $0xa8] sm:$0xf]
    %v1217 = vld [vmem:[%s5 + $0xac] sm:$0xf]
    %v1218 = vld [vmem:[%s5 + $0xb0] sm:$0xf]
    %v1219 = vld [vmem:[%s5 + $0xb4] sm:$0xf]
    %v1220 = vld [vmem:[%s5 + $0xb8] sm:$0xf]
    %v1221 = vld [vmem:[%s5 + $0xbc] sm:$0xf]
    %v1222 = vld [vmem:[%s5 + $0xc0] sm:$0xf]
    %v1223 = vld [vmem:[%s5 + $0xc4] sm:$0xf]
    %v1224 = vld [vmem:[%s5 + $0xc8] sm:$0xf]
    %v1225 = vld [vmem:[%s5 + $0xcc] sm:$0xf]
    %v1226 = vld [vmem:[%s5 + $0xd0] sm:$0xf]
    %v1227 = vld [vmem:[%s5 + $0xd4] sm:$0xf]
    %v1228 = vld [vmem:[%s5 + $0xd8] sm:$0xf]
    %v1229 = vld [vmem:[%s5 + $0xdc] sm:$0xf]
    %v1230 = vld [vmem:[%s5 + $0xe0] sm:$0xf]
    %v1231 = vld [vmem:[%s5 + $0xe4] sm:$0xf]
    %v1232 = vld [vmem:[%s5 + $0xe8] sm:$0xf]
    %v1233 = vld [vmem:[%s5 + $0xec] sm:$0xf]
    %v1234 = vld [vmem:[%s5 + $0xf0] sm:$0xf]
    %v1235 = vld [vmem:[%s5 + $0xf4] sm:$0xf]
    %v1236 = vld [vmem:[%s5 + $0xf8] sm:$0xf]
    %v1237 = vld [vmem:[%s5 + $0xfc] sm:$0xf]
    %v1238 = vld [vmem:[%s5 + $0x100] sm:$0xf]
    %v1239 = vld [vmem:[%s5 + $0x104] sm:$0xf]
    %v1240 = vld [vmem:[%s5 + $0x108] sm:$0xf]
    %v1241 = vld [vmem:[%s5 + $0x10c] sm:$0xf]
    %v1242 = vld [vmem:[%s5 + $0x110] sm:$0xf]
    %v1243 = vld [vmem:[%s5 + $0x114] sm:$0xf]
    %v1244 = vld [vmem:[%s5 + $0x118] sm:$0xf]
    %v1245 = vld [vmem:[%s5 + $0x11c] sm:$0xf]
    %v1246 = vld [vmem:[%s6] sm:$0x1]
    %v1248 = vlaneseq
    %v1249 = vshrl.u32 %v1248, 7
    %v1250 = vsub.s32 0, %v1249
    %v1251 = vrot.slane %v1246, %v1250
    %v1325 = vunpack.c.l.b16 %v1174
    %v1326 = vunpack.c.l.b16 %v1175
    %v1327 = vunpack.c.l.b16 %v1176
    %v1328 = vunpack.c.l.b16 %v1177
    %v1329 = vunpack.c.l.b16 %v1178
    %v1330 = vunpack.c.l.b16 %v1179
    %v1331 = vunpack.c.l.b16 %v1180
    %v1332 = vunpack.c.l.b16 %v1181
    %v1333 = vunpack.c.l.b16 %v1182
    %v1334 = vunpack.c.l.b16 %v1183
    %v1335 = vunpack.c.l.b16 %v1184
    %v1336 = vunpack.c.l.b16 %v1185
    %v1337 = vunpack.c.l.b16 %v1186
    %v1338 = vunpack.c.l.b16 %v1187
    %v1339 = vunpack.c.l.b16 %v1188
    %v1340 = vunpack.c.l.b16 %v1189
    %v1341 = vunpack.c.l.b16 %v1190
    %v1342 = vunpack.c.l.b16 %v1191
    %v1343 = vunpack.c.l.b16 %v1192
    %v1344 = vunpack.c.l.b16 %v1193
    %v1345 = vunpack.c.l.b16 %v1194
    %v1346 = vunpack.c.l.b16 %v1195
    %v1347 = vunpack.c.l.b16 %v1196
    %v1348 = vunpack.c.l.b16 %v1197
    %v1349 = vunpack.c.l.b16 %v1198
    %v1350 = vunpack.c.l.b16 %v1199
    %v1351 = vunpack.c.l.b16 %v1200
    %v1352 = vunpack.c.l.b16 %v1201
    %v1353 = vunpack.c.l.b16 %v1202
    %v1354 = vunpack.c.l.b16 %v1203
    %v1355 = vunpack.c.l.b16 %v1204
    %v1356 = vunpack.c.l.b16 %v1205
    %v1357 = vunpack.c.l.b16 %v1206
    %v1358 = vunpack.c.l.b16 %v1207
    %v1359 = vunpack.c.l.b16 %v1208
    %v1360 = vunpack.c.l.b16 %v1209
    %v1361 = vunpack.c.l.b16 %v1210
    %v1362 = vunpack.c.l.b16 %v1211
    %v1363 = vunpack.c.l.b16 %v1212
    %v1364 = vunpack.c.l.b16 %v1213
    %v1365 = vunpack.c.l.b16 %v1214
    %v1366 = vunpack.c.l.b16 %v1215
    %v1367 = vunpack.c.l.b16 %v1216
    %v1368 = vunpack.c.l.b16 %v1217
    %v1369 = vunpack.c.l.b16 %v1218
    %v1370 = vunpack.c.l.b16 %v1219
    %v1371 = vunpack.c.l.b16 %v1220
    %v1372 = vunpack.c.l.b16 %v1221
    %v1373 = vunpack.c.l.b16 %v1222
    %v1374 = vunpack.c.l.b16 %v1223
    %v1375 = vunpack.c.l.b16 %v1224
    %v1376 = vunpack.c.l.b16 %v1225
    %v1377 = vunpack.c.l.b16 %v1226
    %v1378 = vunpack.c.l.b16 %v1227
    %v1379 = vunpack.c.l.b16 %v1228
    %v1380 = vunpack.c.l.b16 %v1229
    %v1381 = vunpack.c.l.b16 %v1230
    %v1382 = vunpack.c.l.b16 %v1231
    %v1383 = vunpack.c.l.b16 %v1232
    %v1384 = vunpack.c.l.b16 %v1233
    %v1385 = vunpack.c.l.b16 %v1234
    %v1386 = vunpack.c.l.b16 %v1235
    %v1387 = vunpack.c.l.b16 %v1236
    %v1388 = vunpack.c.l.b16 %v1237
    %v1389 = vunpack.c.l.b16 %v1238
    %v1390 = vunpack.c.l.b16 %v1239
    %v1391 = vunpack.c.l.b16 %v1240
    %v1392 = vunpack.c.l.b16 %v1241
    %v1393 = vunpack.c.l.b16 %v1242
    %v1394 = vunpack.c.l.b16 %v1243
    %v1395 = vunpack.c.l.b16 %v1244
    %v1396 = vunpack.c.l.b16 %v1245
    %v1397 = vpack.c.b16 %v1326, %v1325
    %v1398 = vpack.c.b16 %v1328, %v1327
    %v1399 = vpack.c.b16 %v1330, %v1329
    %v1400 = vpack.c.b16 %v1332, %v1331
    %v1401 = vpack.c.b16 %v1334, %v1333
    %v1402 = vpack.c.b16 %v1336, %v1335
    %v1403 = vpack.c.b16 %v1338, %v1337
    %v1404 = vpack.c.b16 %v1340, %v1339
    %v1405 = vpack.c.b16 %v1342, %v1341
    %v1406 = vpack.c.b16 %v1344, %v1343
    %v1407 = vpack.c.b16 %v1346, %v1345
    %v1408 = vpack.c.b16 %v1348, %v1347
    %v1409 = vpack.c.b16 %v1350, %v1349
    %v1410 = vpack.c.b16 %v1352, %v1351
    %v1411 = vpack.c.b16 %v1354, %v1353
    %v1412 = vpack.c.b16 %v1356, %v1355
    %v1413 = vpack.c.b16 %v1358, %v1357
    %v1414 = vpack.c.b16 %v1360, %v1359
    %v1415 = vpack.c.b16 %v1362, %v1361
    %v1416 = vpack.c.b16 %v1364, %v1363
    %v1417 = vpack.c.b16 %v1366, %v1365
    %v1418 = vpack.c.b16 %v1368, %v1367
    %v1419 = vpack.c.b16 %v1370, %v1369
    %v1420 = vpack.c.b16 %v1372, %v1371
    %v1421 = vpack.c.b16 %v1374, %v1373
    %v1422 = vpack.c.b16 %v1376, %v1375
    %v1423 = vpack.c.b16 %v1378, %v1377
    %v1424 = vpack.c.b16 %v1380, %v1379
    %v1425 = vpack.c.b16 %v1382, %v1381
    %v1426 = vpack.c.b16 %v1384, %v1383
    %v1427 = vpack.c.b16 %v1386, %v1385
    %v1428 = vpack.c.b16 %v1388, %v1387
    %v1429 = vpack.c.b16 %v1390, %v1389
    %v1430 = vpack.c.b16 %v1392, %v1391
    %v1431 = vpack.c.b16 %v1394, %v1393
    %v1432 = vpack.c.b16 %v1396, %v1395
    %v1470 = vsel %vm678, %v1173, 0
    %1472 = vmatprep.subr.bf16.mxu0 0
    %1473 = vmatpush1.bf16.msra.mxu0 %v1397
    %1474 = vmatprep.subr.bf16.mxu0 0
    %1475 = vmatpush1.bf16.msra.mxu0 %v1398
    %1476 = vmatprep.subr.bf16.mxu0 0
    %1477 = vmatpush1.bf16.msra.mxu0 %v1399
    %1478 = vmatprep.subr.bf16.mxu0 0
    %1479 = vmatpush1.bf16.msra.mxu0 %v1400
    %1480 = vmatprep.subr.bf16.mxu0 0
    %1481 = vmatpush1.bf16.msra.mxu0 %v1401
    %1482 = vmatprep.subr.bf16.mxu0 0
    %1483 = vmatpush1.bf16.msra.mxu0 %v1402
    %1484 = vmatprep.subr.bf16.mxu0 0
    %1485 = vmatpush1.bf16.msra.mxu0 %v1403
    %1486 = vmatprep.subr.bf16.mxu0 0
    %1487 = vmatpush1.bf16.msra.mxu0 %v1404
    %1488 = vmatprep.subr.bf16.mxu0 0
    %1489 = vmatpush1.bf16.msra.mxu0 %v1405
    %1490 = vmatprep.subr.bf16.mxu0 0
    %1491 = vmatpush1.bf16.msra.mxu0 %v1406
    %1492 = vmatprep.subr.bf16.mxu0 0
    %1493 = vmatpush1.bf16.msra.mxu0 %v1407
    %1494 = vmatprep.subr.bf16.mxu0 0
    %1495 = vmatpush1.bf16.msra.mxu0 %v1408
    %1496 = vmatprep.subr.bf16.mxu0 0
    %1497 = vmatpush1.bf16.msra.mxu0 %v1409
    %1498 = vmatprep.subr.bf16.mxu0 0
    %1499 = vmatpush1.bf16.msra.mxu0 %v1410
    %1500 = vmatprep.subr.bf16.mxu0 0
    %1501 = vmatpush1.bf16.msra.mxu0 %v1411
    %1502 = vmatprep.subr.bf16.mxu0 0
    %1503 = vmatpush1.bf16.msra.mxu0 %v1412
    %1504 = vmatprep.mubr.bf16.mxu0 %v1170
    %1505 = vmatmul.mubr.bf16.gmra.mrb[0].mxu0 %v1169
    %v1506 = vpop.f32.mrb[0].mxu0
    %v1507 = vadd.f32 %v1251, %v1506
    %v1508 = vpop.f32.mrb[0].mxu0
    %v1509 = vpop.f32.mrb[0].mxu0
    %v1510 = vpop.f32.mrb[0].mxu0
    %1511 = vdwg.mxu0
    %1512 = vmatprep.subr.bf16.mxu0 0
    %1513 = vmatpush1.bf16.msra.mxu0 %v1413
    %1514 = vmatprep.subr.bf16.mxu0 0
    %1515 = vmatpush1.bf16.msra.mxu0 %v1414
    %1516 = vmatprep.subr.bf16.mxu0 0
    %1517 = vmatpush1.bf16.msra.mxu0 %v1415
    %1518 = vmatprep.subr.bf16.mxu0 0
    %1519 = vmatpush1.bf16.msra.mxu0 %v1416
    %1520 = vmatprep.subr.bf16.mxu0 0
    %1521 = vmatpush1.bf16.msra.mxu0 %v1417
    %1522 = vmatprep.subr.bf16.mxu0 0
    %1523 = vmatpush1.bf16.msra.mxu0 %v1418
    %1524 = vmatprep.subr.bf16.mxu0 0
    %1525 = vmatpush1.bf16.msra.mxu0 %v1419
    %1526 = vmatprep.subr.bf16.mxu0 0
    %1527 = vmatpush1.bf16.msra.mxu0 %v1420
    %1528 = vmatprep.subr.bf16.mxu0 0
    %1529 = vmatpush1.bf16.msra.mxu0 %v1421
    %1530 = vmatprep.subr.bf16.mxu0 0
    %1531 = vmatpush1.bf16.msra.mxu0 %v1422
    %1532 = vmatprep.subr.bf16.mxu0 0
    %1533 = vmatpush1.bf16.msra.mxu0 %v1423
    %1534 = vmatprep.subr.bf16.mxu0 0
    %1535 = vmatpush1.bf16.msra.mxu0 %v1424
    %1536 = vmatprep.subr.bf16.mxu0 0
    %1537 = vmatpush1.bf16.msra.mxu0 %v1425
    %1538 = vmatprep.subr.bf16.mxu0 0
    %1539 = vmatpush1.bf16.msra.mxu0 %v1426
    %1540 = vmatprep.subr.bf16.mxu0 0
    %1541 = vmatpush1.bf16.msra.mxu0 %v1427
    %1542 = vmatprep.subr.bf16.mxu0 0
    %1543 = vmatpush1.bf16.msra.mxu0 %v1428
    %1544 = vmatprep.mubr.bf16.mxu0 %v1172
    %1545 = vmatmul.mubr.bf16.gmra.mrb[0].mxu0 %v1171
    %v1546 = vpop.f32.mrb[0].mxu0
    %v1547 = vadd.f32 %v1507, %v1546
    %v1548 = vpop.f32.mrb[0].mxu0
    %v1549 = vpop.f32.mrb[0].mxu0
    %v1550 = vpop.f32.mrb[0].mxu0
    %1551 = vdwg.mxu0
    %1552 = vmatprep.subr.bf16.mxu0 0
    %1553 = vmatpush1.bf16.msra.mxu0 %v1429
    %1554 = vmatprep.subr.bf16.mxu0 0
    %1555 = vmatpush1.bf16.msra.mxu0 %v1430
    %1556 = vmatprep.subr.bf16.mxu0 0
    %1557 = vmatpush1.bf16.msra.mxu0 %v1431
    %1558 = vmatprep.subr.bf16.mxu0 0
    %1559 = vmatpush1.bf16.msra.mxu0 %v1432
    %1560 = vmatprep.subr.bf16.mxu0 0
    %1561 = vmatpush1.bf16.msra.mxu0 0
    %1562 = vmatprep.subr.bf16.mxu0 0
    %1563 = vmatpush1.bf16.msra.mxu0 0
    %1564 = vmatprep.subr.bf16.mxu0 0
    %1565 = vmatpush1.bf16.msra.mxu0 0
    %1566 = vmatprep.subr.bf16.mxu0 0
    %1567 = vmatpush1.bf16.msra.mxu0 0
    %1568 = vmatprep.subr.bf16.mxu0 0
    %1569 = vmatpush1.bf16.msra.mxu0 0
    %1570 = vmatprep.subr.bf16.mxu0 0
    %1571 = vmatpush1.bf16.msra.mxu0 0
    %1572 = vmatprep.subr.bf16.mxu0 0
    %1573 = vmatpush1.bf16.msra.mxu0 0
    %1574 = vmatprep.subr.bf16.mxu0 0
    %1575 = vmatpush1.bf16.msra.mxu0 0
    %1576 = vmatprep.subr.bf16.mxu0 0
    %1577 = vmatpush1.bf16.msra.mxu0 0
    %1578 = vmatprep.subr.bf16.mxu0 0
    %1579 = vmatpush1.bf16.msra.mxu0 0
    %1580 = vmatprep.subr.bf16.mxu0 0
    %1581 = vmatpush1.bf16.msra.mxu0 0
    %1582 = vmatprep.subr.bf16.mxu0 0
    %1583 = vmatpush1.bf16.msra.mxu0 0
    %1584 = vmatprep.mubr.bf16.mxu0 0
    %1585 = vmatmul.mubr.bf16.gmra.mrb[0].mxu0 %v1470
    %v1586 = vpop.f32.mrb[0].mxu0
    %v1587 = vadd.f32 %v1547, %v1586
    %v1588 = vpop.f32.mrb[0].mxu0
    %v1589 = vpop.f32.mrb[0].mxu0
    %v1590 = vpop.f32.mrb[0].mxu0
    %1591 = vdwg.mxu0
    %v1592 = vmax.f32 %v1587, 0.0
    %v1593 = vpack.c.bf16 %v1592, %v1592
    %v1594 = vld [vmem:[%s7] sm:$0xff]
    %v1595 = vld [vmem:[%s7 + $0x8] sm:$0xff]
    %v1596 = vld [vmem:[%s7 + $0x10] sm:$0xff]
    %v1597 = vld [vmem:[%s7 + $0x18] sm:$0xff]
    %v1598 = vld [vmem:[%s7 + $0x20] sm:$0xff]
    %v1599 = vld [vmem:[%s7 + $0x28] sm:$0xff]
    %v1600 = vld [vmem:[%s7 + $0x30] sm:$0xff]
    %v1601 = vld [vmem:[%s7 + $0x38] sm:$0xff]
    %v1602 = vld [vmem:[%s7 + $0x40] sm:$0xff]
    %v1603 = vld [vmem:[%s7 + $0x48] sm:$0xff]
    %v1604 = vld [vmem:[%s7 + $0x50] sm:$0xff]
    %v1605 = vld [vmem:[%s7 + $0x58] sm:$0xff]
    %v1606 = vld [vmem:[%s7 + $0x60] sm:$0xff]
    %v1607 = vld [vmem:[%s7 + $0x68] sm:$0xff]
    %v1608 = vld [vmem:[%s7 + $0x70] sm:$0xff]
    %v1609 = vld [vmem:[%s7 + $0x78] sm:$0xff]
    %v1610 = vld [vmem:[%s7 + $0x80] sm:$0xff]
    %v1611 = vld [vmem:[%s7 + $0x88] sm:$0xff]
    %v1612 = vld [vmem:[%s7 + $0x90] sm:$0xff]
    %v1613 = vld [vmem:[%s7 + $0x98] sm:$0xff]
    %v1614 = vld [vmem:[%s7 + $0xa0] sm:$0xff]
    %v1615 = vld [vmem:[%s7 + $0xa8] sm:$0xff]
    %v1616 = vld [vmem:[%s7 + $0xb0] sm:$0xff]
    %v1617 = vld [vmem:[%s7 + $0xb8] sm:$0xff]
    %v1618 = vld [vmem:[%s7 + $0xc0] sm:$0xff]
    %v1619 = vld [vmem:[%s7 + $0xc8] sm:$0xff]
    %v1620 = vld [vmem:[%s7 + $0xd0] sm:$0xff]
    %v1621 = vld [vmem:[%s7 + $0xd8] sm:$0xff]
    %v1622 = vld [vmem:[%s7 + $0xe0] sm:$0xff]
    %v1623 = vld [vmem:[%s7 + $0xe8] sm:$0xff]
    %v1624 = vld [vmem:[%s7 + $0xf0] sm:$0xff]
    %v1625 = vld [vmem:[%s7 + $0xf8] sm:$0xff]
    %v1626 = vld [vmem:[%s8] sm:$0xff]
    %v1628 = vlaneseq
    %v1629 = vshrl.u32 %v1628, 7
    %v1630 = vsub.s32 0, %v1629
    %v1631 = vrot.slane %v1626, %v1630
    %v1632 = vlaneseq
    %v1633 = vshrl.u32 %v1632, 7
    %v1634 = vsub.s32 1, %v1633
    %v1635 = vrot.slane %v1626, %v1634
    %v1636 = vlaneseq
    %v1637 = vshrl.u32 %v1636, 7
    %v1638 = vsub.s32 2, %v1637
    %v1639 = vrot.slane %v1626, %v1638
    %v1640 = vlaneseq
    %v1641 = vshrl.u32 %v1640, 7
    %v1642 = vsub.s32 3, %v1641
    %v1643 = vrot.slane %v1626, %v1642
    %v1644 = vlaneseq
    %v1645 = vshrl.u32 %v1644, 7
    %v1646 = vsub.s32 4, %v1645
    %v1647 = vrot.slane %v1626, %v1646
    %v1648 = vlaneseq
    %v1649 = vshrl.u32 %v1648, 7
    %v1650 = vsub.s32 5, %v1649
    %v1651 = vrot.slane %v1626, %v1650
    %v1652 = vlaneseq
    %v1653 = vshrl.u32 %v1652, 7
    %v1654 = vsub.s32 6, %v1653
    %v1655 = vrot.slane %v1626, %v1654
    %v1656 = vlaneseq
    %v1657 = vshrl.u32 %v1656, 7
    %v1658 = vsub.s32 7, %v1657
    %v1659 = vrot.slane %v1626, %v1658
    %v1700 = vunpack.c.l.b16 %v1594
    %v1701 = vunpack.c.h.b16 %v1594
    %v1702 = vunpack.c.l.b16 %v1595
    %v1703 = vunpack.c.h.b16 %v1595
    %v1704 = vunpack.c.l.b16 %v1596
    %v1705 = vunpack.c.h.b16 %v1596
    %v1706 = vunpack.c.l.b16 %v1597
    %v1707 = vunpack.c.h.b16 %v1597
    %v1708 = vunpack.c.l.b16 %v1598
    %v1709 = vunpack.c.h.b16 %v1598
    %v1710 = vunpack.c.l.b16 %v1599
    %v1711 = vunpack.c.h.b16 %v1599
    %v1712 = vunpack.c.l.b16 %v1600
    %v1713 = vunpack.c.h.b16 %v1600
    %v1714 = vunpack.c.l.b16 %v1601
    %v1715 = vunpack.c.h.b16 %v1601
    %v1716 = vunpack.c.l.b16 %v1602
    %v1717 = vunpack.c.h.b16 %v1602
    %v1718 = vunpack.c.l.b16 %v1603
    %v1719 = vunpack.c.h.b16 %v1603
    %v1720 = vunpack.c.l.b16 %v1604
    %v1721 = vunpack.c.h.b16 %v1604
    %v1722 = vunpack.c.l.b16 %v1605
    %v1723 = vunpack.c.h.b16 %v1605
    %v1724 = vunpack.c.l.b16 %v1606
    %v1725 = vunpack.c.h.b16 %v1606
    %v1726 = vunpack.c.l.b16 %v1607
    %v1727 = vunpack.c.h.b16 %v1607
    %v1728 = vunpack.c.l.b16 %v1608
    %v1729 = vunpack.c.h.b16 %v1608
    %v1730 = vunpack.c.l.b16 %v1609
    %v1731 = vunpack.c.h.b16 %v1609
    %v1732 = vunpack.c.l.b16 %v1610
    %v1733 = vunpack.c.h.b16 %v1610
    %v1734 = vunpack.c.l.b16 %v1611
    %v1735 = vunpack.c.h.b16 %v1611
    %v1736 = vunpack.c.l.b16 %v1612
    %v1737 = vunpack.c.h.b16 %v1612
    %v1738 = vunpack.c.l.b16 %v1613
    %v1739 = vunpack.c.h.b16 %v1613
    %v1740 = vunpack.c.l.b16 %v1614
    %v1741 = vunpack.c.h.b16 %v1614
    %v1742 = vunpack.c.l.b16 %v1615
    %v1743 = vunpack.c.h.b16 %v1615
    %v1744 = vunpack.c.l.b16 %v1616
    %v1745 = vunpack.c.h.b16 %v1616
    %v1746 = vunpack.c.l.b16 %v1617
    %v1747 = vunpack.c.h.b16 %v1617
    %v1748 = vunpack.c.l.b16 %v1618
    %v1749 = vunpack.c.h.b16 %v1618
    %v1750 = vunpack.c.l.b16 %v1619
    %v1751 = vunpack.c.h.b16 %v1619
    %v1752 = vunpack.c.l.b16 %v1620
    %v1753 = vunpack.c.h.b16 %v1620
    %v1754 = vunpack.c.l.b16 %v1621
    %v1755 = vunpack.c.h.b16 %v1621
    %v1756 = vunpack.c.l.b16 %v1622
    %v1757 = vunpack.c.h.b16 %v1622
    %v1758 = vunpack.c.l.b16 %v1623
    %v1759 = vunpack.c.h.b16 %v1623
    %v1760 = vunpack.c.l.b16 %v1624
    %v1761 = vunpack.c.h.b16 %v1624
    %v1762 = vunpack.c.l.b16 %v1625
    %v1763 = vunpack.c.h.b16 %v1625
    %v1764 = vpack.c.b16 %v1708, %v1700
    %v1765 = vpack.c.b16 %v1709, %v1701
    %v1766 = vpack.c.b16 %v1710, %v1702
    %v1767 = vpack.c.b16 %v1711, %v1703
    %v1768 = vpack.c.b16 %v1712, %v1704
    %v1769 = vpack.c.b16 %v1713, %v1705
    %v1770 = vpack.c.b16 %v1714, %v1706
    %v1771 = vpack.c.b16 %v1715, %v1707
    %v1772 = vpack.c.b16 %v1724, %v1716
    %v1773 = vpack.c.b16 %v1725, %v1717
    %v1774 = vpack.c.b16 %v1726, %v1718
    %v1775 = vpack.c.b16 %v1727, %v1719
    %v1776 = vpack.c.b16 %v1728, %v1720
    %v1777 = vpack.c.b16 %v1729, %v1721
    %v1778 = vpack.c.b16 %v1730, %v1722
    %v1779 = vpack.c.b16 %v1731, %v1723
    %v1780 = vpack.c.b16 %v1740, %v1732
    %v1781 = vpack.c.b16 %v1741, %v1733
    %v1782 = vpack.c.b16 %v1742, %v1734
    %v1783 = vpack.c.b16 %v1743, %v1735
    %v1784 = vpack.c.b16 %v1744, %v1736
    %v1785 = vpack.c.b16 %v1745, %v1737
    %v1786 = vpack.c.b16 %v1746, %v1738
    %v1787 = vpack.c.b16 %v1747, %v1739
    %v1788 = vpack.c.b16 %v1756, %v1748
    %v1789 = vpack.c.b16 %v1757, %v1749
    %v1790 = vpack.c.b16 %v1758, %v1750
    %v1791 = vpack.c.b16 %v1759, %v1751
    %v1792 = vpack.c.b16 %v1760, %v1752
    %v1793 = vpack.c.b16 %v1761, %v1753
    %v1794 = vpack.c.b16 %v1762, %v1754
    %v1795 = vpack.c.b16 %v1763, %v1755
    %v1829 = vsel %vm678, %v1593, 0
    %1831 = vmatprep.subr.bf16.mxu0 %v1765
    %1832 = vmatpush1.bf16.msra.mxu0 %v1764
    %1833 = vmatprep.subr.bf16.mxu0 %v1773
    %1834 = vmatpush1.bf16.msra.mxu0 %v1772
    %1835 = vmatprep.subr.bf16.mxu0 %v1781
    %1836 = vmatpush1.bf16.msra.mxu0 %v1780
    %1837 = vmatprep.subr.bf16.mxu0 %v1789
    %1838 = vmatpush1.bf16.msra.mxu0 %v1788
    %1839 = vmatprep.subr.bf16.mxu0 0
    %1840 = vmatpush1.bf16.msra.mxu0 0
    %1841 = vmatprep.subr.bf16.mxu0 0
    %1842 = vmatpush1.bf16.msra.mxu0 0
    %1843 = vmatprep.subr.bf16.mxu0 0
    %1844 = vmatpush1.bf16.msra.mxu0 0
    %1845 = vmatprep.subr.bf16.mxu0 0
    %1846 = vmatpush1.bf16.msra.mxu0 0
    %1847 = vmatprep.subr.bf16.mxu0 0
    %1848 = vmatpush1.bf16.msra.mxu0 0
    %1849 = vmatprep.subr.bf16.mxu0 0
    %1850 = vmatpush1.bf16.msra.mxu0 0
    %1851 = vmatprep.subr.bf16.mxu0 0
    %1852 = vmatpush1.bf16.msra.mxu0 0
    %1853 = vmatprep.subr.bf16.mxu0 0
    %1854 = vmatpush1.bf16.msra.mxu0 0
    %1855 = vmatprep.subr.bf16.mxu0 0
    %1856 = vmatpush1.bf16.msra.mxu0 0
    %1857 = vmatprep.subr.bf16.mxu0 0
    %1858 = vmatpush1.bf16.msra.mxu0 0
    %1859 = vmatprep.subr.bf16.mxu0 0
    %1860 = vmatpush1.bf16.msra.mxu0 0
    %1861 = vmatprep.subr.bf16.mxu0 0
    %1862 = vmatpush1.bf16.msra.mxu0 0
    %1863 = vmatprep.mubr.bf16.mxu0 0
    %1864 = vmatmul.mubr.bf16.gmra.mrb[0].mxu0 %v1829
    %v1865 = vpop.f32.mrb[0].mxu0
    %v1866 = vadd.f32 %v1631, %v1865
    %v1867 = vpop.f32.mrb[0].mxu0
    %v1868 = vadd.f32 %v1635, %v1867
    %v1869 = vpop.f32.mrb[0].mxu0
    %v1870 = vpop.f32.mrb[0].mxu0
    %1871 = vdwg.mxu0
    %1872 = vmatprep.subr.bf16.mxu0 %v1767
    %1873 = vmatpush1.bf16.msra.mxu0 %v1766
    %1874 = vmatprep.subr.bf16.mxu0 %v1775
    %1875 = vmatpush1.bf16.msra.mxu0 %v1774
    %1876 = vmatprep.subr.bf16.mxu0 %v1783
    %1877 = vmatpush1.bf16.msra.mxu0 %v1782
    %1878 = vmatprep.subr.bf16.mxu0 %v1791
    %1879 = vmatpush1.bf16.msra.mxu0 %v1790
    %1880 = vmatprep.subr.bf16.mxu0 0
    %1881 = vmatpush1.bf16.msra.mxu0 0
    %1882 = vmatprep.subr.bf16.mxu0 0
    %1883 = vmatpush1.bf16.msra.mxu0 0
    %1884 = vmatprep.subr.bf16.mxu0 0
    %1885 = vmatpush1.bf16.msra.mxu0 0
    %1886 = vmatprep.subr.bf16.mxu0 0
    %1887 = vmatpush1.bf16.msra.mxu0 0
    %1888 = vmatprep.subr.bf16.mxu0 0
    %1889 = vmatpush1.bf16.msra.mxu0 0
    %1890 = vmatprep.subr.bf16.mxu0 0
    %1891 = vmatpush1.bf16.msra.mxu0 0
    %1892 = vmatprep.subr.bf16.mxu0 0
    %1893 = vmatpush1.bf16.msra.mxu0 0
    %1894 = vmatprep.subr.bf16.mxu0 0
    %1895 = vmatpush1.bf16.msra.mxu0 0
    %1896 = vmatprep.subr.bf16.mxu0 0
    %1897 = vmatpush1.bf16.msra.mxu0 0
    %1898 = vmatprep.subr.bf16.mxu0 0
    %1899 = vmatpush1.bf16.msra.mxu0 0
    %1900 = vmatprep.subr.bf16.mxu0 0
    %1901 = vmatpush1.bf16.msra.mxu0 0
    %1902 = vmatprep.subr.bf16.mxu0 0
    %1903 = vmatpush1.bf16.msra.mxu0 0
    %1904 = vmatprep.mubr.bf16.mxu0 0
    %1905 = vmatmul.mubr.bf16.gmra.mrb[0].mxu0 %v1829
    %v1906 = vpop.f32.mrb[0].mxu0
    %v1907 = vadd.f32 %v1639, %v1906
    %v1908 = vpop.f32.mrb[0].mxu0
    %v1909 = vadd.f32 %v1643, %v1908
    %v1910 = vpop.f32.mrb[0].mxu0
    %v1911 = vpop.f32.mrb[0].mxu0
    %1912 = vdwg.mxu0
    %1913 = vmatprep.subr.bf16.mxu0 %v1769
    %1914 = vmatpush1.bf16.msra.mxu0 %v1768
    %1915 = vmatprep.subr.bf16.mxu0 %v1777
    %1916 = vmatpush1.bf16.msra.mxu0 %v1776
    %1917 = vmatprep.subr.bf16.mxu0 %v1785
    %1918 = vmatpush1.bf16.msra.mxu0 %v1784
    %1919 = vmatprep.subr.bf16.mxu0 %v1793
    %1920 = vmatpush1.bf16.msra.mxu0 %v1792
    %1921 = vmatprep.subr.bf16.mxu0 0
    %1922 = vmatpush1.bf16.msra.mxu0 0
    %1923 = vmatprep.subr.bf16.mxu0 0
    %1924 = vmatpush1.bf16.msra.mxu0 0
    %1925 = vmatprep.subr.bf16.mxu0 0
    %1926 = vmatpush1.bf16.msra.mxu0 0
    %1927 = vmatprep.subr.bf16.mxu0 0
    %1928 = vmatpush1.bf16.msra.mxu0 0
    %1929 = vmatprep.subr.bf16.mxu0 0
    %1930 = vmatpush1.bf16.msra.mxu0 0
    %1931 = vmatprep.subr.bf16.mxu0 0
    %1932 = vmatpush1.bf16.msra.mxu0 0
    %1933 = vmatprep.subr.bf16.mxu0 0
    %1934 = vmatpush1.bf16.msra.mxu0 0
    %1935 = vmatprep.subr.bf16.mxu0 0
    %1936 = vmatpush1.bf16.msra.mxu0 0
    %1937 = vmatprep.subr.bf16.mxu0 0
    %1938 = vmatpush1.bf16.msra.mxu0 0
    %1939 = vmatprep.subr.bf16.mxu0 0
    %1940 = vmatpush1.bf16.msra.mxu0 0
    %1941 = vmatprep.subr.bf16.mxu0 0
    %1942 = vmatpush1.bf16.msra.mxu0 0
    %1943 = vmatprep.subr.bf16.mxu0 0
    %1944 = vmatpush1.bf16.msra.mxu0 0
    %1945 = vmatprep.mubr.bf16.mxu0 0
    %1946 = vmatmul.mubr.bf16.gmra.mrb[0].mxu0 %v1829
    %v1947 = vpop.f32.mrb[0].mxu0
    %v1948 = vadd.f32 %v1647, %v1947
    %v1949 = vpop.f32.mrb[0].mxu0
    %v1950 = vadd.f32 %v1651, %v1949
    %v1951 = vpop.f32.mrb[0].mxu0
    %v1952 = vpop.f32.mrb[0].mxu0
    %1953 = vdwg.mxu0
    %1954 = vmatprep.subr.bf16.mxu0 %v1771
    %1955 = vmatpush1.bf16.msra.mxu0 %v1770
    %1956 = vmatprep.subr.bf16.mxu0 %v1779
    %1957 = vmatpush1.bf16.msra.mxu0 %v1778
    %1958 = vmatprep.subr.bf16.mxu0 %v1787
    %1959 = vmatpush1.bf16.msra.mxu0 %v1786
    %1960 = vmatprep.subr.bf16.mxu0 %v1795
    %1961 = vmatpush1.bf16.msra.mxu0 %v1794
    %1962 = vmatprep.subr.bf16.mxu0 0
    %1963 = vmatpush1.bf16.msra.mxu0 0
    %1964 = vmatprep.subr.bf16.mxu0 0
    %1965 = vmatpush1.bf16.msra.mxu0 0
    %1966 = vmatprep.subr.bf16.mxu0 0
    %1967 = vmatpush1.bf16.msra.mxu0 0
    %1968 = vmatprep.subr.bf16.mxu0 0
    %1969 = vmatpush1.bf16.msra.mxu0 0
    %1970 = vmatprep.subr.bf16.mxu0 0
    %1971 = vmatpush1.bf16.msra.mxu0 0
    %1972 = vmatprep.subr.bf16.mxu0 0
    %1973 = vmatpush1.bf16.msra.mxu0 0
    %1974 = vmatprep.subr.bf16.mxu0 0
    %1975 = vmatpush1.bf16.msra.mxu0 0
    %1976 = vmatprep.subr.bf16.mxu0 0
    %1977 = vmatpush1.bf16.msra.mxu0 0
    %1978 = vmatprep.subr.bf16.mxu0 0
    %1979 = vmatpush1.bf16.msra.mxu0 0
    %1980 = vmatprep.subr.bf16.mxu0 0
    %1981 = vmatpush1.bf16.msra.mxu0 0
    %1982 = vmatprep.subr.bf16.mxu0 0
    %1983 = vmatpush1.bf16.msra.mxu0 0
    %1984 = vmatprep.subr.bf16.mxu0 0
    %1985 = vmatpush1.bf16.msra.mxu0 0
    %1986 = vmatprep.mubr.bf16.mxu0 0
    %1987 = vmatmul.mubr.bf16.gmra.mrb[0].mxu0 %v1829
    %v1988 = vpop.f32.mrb[0].mxu0
    %v1989 = vadd.f32 %v1655, %v1988
    %v1990 = vpop.f32.mrb[0].mxu0
    %v1991 = vadd.f32 %v1659, %v1990
    %v1992 = vpop.f32.mrb[0].mxu0
    %v1993 = vpop.f32.mrb[0].mxu0
    %1994 = vdwg.mxu0
    %v1995 = vmax.f32 %v1866, 0.0
    %v1996 = vmax.f32 %v1868, 0.0
    %v1997 = vmax.f32 %v1907, 0.0
    %v1998 = vmax.f32 %v1909, 0.0
    %v1999 = vmax.f32 %v1948, 0.0
    %v2000 = vmax.f32 %v1950, 0.0
    %v2001 = vmax.f32 %v1989, 0.0
    %v2002 = vmax.f32 %v1991, 0.0
    %v2003 = vpack.c.bf16 %v1995, %v1995
    %v2004 = vpack.c.bf16 %v1996, %v1996
    %v2005 = vpack.c.bf16 %v1997, %v1997
    %v2006 = vpack.c.bf16 %v1998, %v1998
    %v2007 = vpack.c.bf16 %v1999, %v1999
    %v2008 = vpack.c.bf16 %v2000, %v2000
    %v2009 = vpack.c.bf16 %v2001, %v2001
    %v2010 = vpack.c.bf16 %v2002, %v2002
    %v2011 = vld [vmem:[%s9] sm:$0xf]
    %v2012 = vld [vmem:[%s9 + $0x4] sm:$0xf]
    %v2013 = vld [vmem:[%s9 + $0x8] sm:$0xf]
    %v2014 = vld [vmem:[%s9 + $0xc] sm:$0xf]
    %v2015 = vld [vmem:[%s9 + $0x10] sm:$0xf]
    %v2016 = vld [vmem:[%s9 + $0x14] sm:$0xf]
    %v2017 = vld [vmem:[%s9 + $0x18] sm:$0xf]
    %v2018 = vld [vmem:[%s9 + $0x1c] sm:$0xf]
    %v2019 = vld [vmem:[%s9 + $0x20] sm:$0xf]
    %v2020 = vld [vmem:[%s9 + $0x24] sm:$0xf]
    %v2021 = vld [vmem:[%s9 + $0x28] sm:$0xf]
    %v2022 = vld [vmem:[%s9 + $0x2c] sm:$0xf]
    %v2023 = vld [vmem:[%s9 + $0x30] sm:$0xf]
    %v2024 = vld [vmem:[%s9 + $0x34] sm:$0xf]
    %v2025 = vld [vmem:[%s9 + $0x38] sm:$0xf]
    %v2026 = vld [vmem:[%s9 + $0x3c] sm:$0xf]
    %v2027 = vld [vmem:[%s9 + $0x40] sm:$0xf]
    %v2028 = vld [vmem:[%s9 + $0x44] sm:$0xf]
    %v2029 = vld [vmem:[%s9 + $0x48] sm:$0xf]
    %v2030 = vld [vmem:[%s9 + $0x4c] sm:$0xf]
    %v2031 = vld [vmem:[%s9 + $0x50] sm:$0xf]
    %v2032 = vld [vmem:[%s9 + $0x54] sm:$0xf]
    %v2033 = vld [vmem:[%s9 + $0x58] sm:$0xf]
    %v2034 = vld [vmem:[%s9 + $0x5c] sm:$0xf]
    %v2035 = vld [vmem:[%s9 + $0x60] sm:$0xf]
    %v2036 = vld [vmem:[%s9 + $0x64] sm:$0xf]
    %v2037 = vld [vmem:[%s9 + $0x68] sm:$0xf]
    %v2038 = vld [vmem:[%s9 + $0x6c] sm:$0xf]
    %v2039 = vld [vmem:[%s9 + $0x70] sm:$0xf]
    %v2040 = vld [vmem:[%s9 + $0x74] sm:$0xf]
    %v2041 = vld [vmem:[%s9 + $0x78] sm:$0xf]
    %v2042 = vld [vmem:[%s9 + $0x7c] sm:$0xf]
    %v2043 = vld [vmem:[%s9 + $0x80] sm:$0xf]
    %v2044 = vld [vmem:[%s9 + $0x84] sm:$0xf]
    %v2045 = vld [vmem:[%s9 + $0x88] sm:$0xf]
    %v2046 = vld [vmem:[%s9 + $0x8c] sm:$0xf]
    %v2047 = vld [vmem:[%s9 + $0x90] sm:$0xf]
    %v2048 = vld [vmem:[%s9 + $0x94] sm:$0xf]
    %v2049 = vld [vmem:[%s9 + $0x98] sm:$0xf]
    %v2050 = vld [vmem:[%s9 + $0x9c] sm:$0xf]
    %v2051 = vld [vmem:[%s9 + $0xa0] sm:$0xf]
    %v2052 = vld [vmem:[%s9 + $0xa4] sm:$0xf]
    %v2053 = vld [vmem:[%s9 + $0xa8] sm:$0xf]
    %v2054 = vld [vmem:[%s9 + $0xac] sm:$0xf]
    %v2055 = vld [vmem:[%s9 + $0xb0] sm:$0xf]
    %v2056 = vld [vmem:[%s9 + $0xb4] sm:$0xf]
    %v2057 = vld [vmem:[%s9 + $0xb8] sm:$0xf]
    %v2058 = vld [vmem:[%s9 + $0xbc] sm:$0xf]
    %v2059 = vld [vmem:[%s9 + $0xc0] sm:$0xf]
    %v2060 = vld [vmem:[%s9 + $0xc4] sm:$0xf]
    %v2061 = vld [vmem:[%s9 + $0xc8] sm:$0xf]
    %v2062 = vld [vmem:[%s9 + $0xcc] sm:$0xf]
    %v2063 = vld [vmem:[%s9 + $0xd0] sm:$0xf]
    %v2064 = vld [vmem:[%s9 + $0xd4] sm:$0xf]
    %v2065 = vld [vmem:[%s9 + $0xd8] sm:$0xf]
    %v2066 = vld [vmem:[%s9 + $0xdc] sm:$0xf]
    %v2067 = vld [vmem:[%s9 + $0xe0] sm:$0xf]
    %v2068 = vld [vmem:[%s9 + $0xe4] sm:$0xf]
    %v2069 = vld [vmem:[%s9 + $0xe8] sm:$0xf]
    %v2070 = vld [vmem:[%s9 + $0xec] sm:$0xf]
    %v2071 = vld [vmem:[%s9 + $0xf0] sm:$0xf]
    %v2072 = vld [vmem:[%s9 + $0xf4] sm:$0xf]
    %v2073 = vld [vmem:[%s9 + $0xf8] sm:$0xf]
    %v2074 = vld [vmem:[%s9 + $0xfc] sm:$0xf]
    %v2075 = vld [vmem:[%s9 + $0x100] sm:$0xf]
    %v2076 = vld [vmem:[%s9 + $0x104] sm:$0xf]
    %v2077 = vld [vmem:[%s9 + $0x108] sm:$0xf]
    %v2078 = vld [vmem:[%s9 + $0x10c] sm:$0xf]
    %v2079 = vld [vmem:[%s9 + $0x110] sm:$0xf]
    %v2080 = vld [vmem:[%s9 + $0x114] sm:$0xf]
    %v2081 = vld [vmem:[%s9 + $0x118] sm:$0xf]
    %v2082 = vld [vmem:[%s9 + $0x11c] sm:$0xf]
    %v2083 = vld [vmem:[%s9 + $0x120] sm:$0xf]
    %v2084 = vld [vmem:[%s9 + $0x124] sm:$0xf]
    %v2085 = vld [vmem:[%s9 + $0x128] sm:$0xf]
    %v2086 = vld [vmem:[%s9 + $0x12c] sm:$0xf]
    %v2087 = vld [vmem:[%s9 + $0x130] sm:$0xf]
    %v2088 = vld [vmem:[%s9 + $0x134] sm:$0xf]
    %v2089 = vld [vmem:[%s9 + $0x138] sm:$0xf]
    %v2090 = vld [vmem:[%s9 + $0x13c] sm:$0xf]
    %v2091 = vld [vmem:[%s9 + $0x140] sm:$0xf]
    %v2092 = vld [vmem:[%s9 + $0x144] sm:$0xf]
    %v2093 = vld [vmem:[%s9 + $0x148] sm:$0xf]
    %v2094 = vld [vmem:[%s9 + $0x14c] sm:$0xf]
    %v2095 = vld [vmem:[%s9 + $0x150] sm:$0xf]
    %v2096 = vld [vmem:[%s9 + $0x154] sm:$0xf]
    %v2097 = vld [vmem:[%s9 + $0x158] sm:$0xf]
    %v2098 = vld [vmem:[%s9 + $0x15c] sm:$0xf]
    %v2099 = vld [vmem:[%s9 + $0x160] sm:$0xf]
    %v2100 = vld [vmem:[%s9 + $0x164] sm:$0xf]
    %v2101 = vld [vmem:[%s9 + $0x168] sm:$0xf]
    %v2102 = vld [vmem:[%s9 + $0x16c] sm:$0xf]
    %v2103 = vld [vmem:[%s9 + $0x170] sm:$0xf]
    %v2104 = vld [vmem:[%s9 + $0x174] sm:$0xf]
    %v2105 = vld [vmem:[%s9 + $0x178] sm:$0xf]
    %v2106 = vld [vmem:[%s9 + $0x17c] sm:$0xf]
    %v2107 = vld [vmem:[%s9 + $0x180] sm:$0xf]
    %v2108 = vld [vmem:[%s9 + $0x184] sm:$0xf]
    %v2109 = vld [vmem:[%s9 + $0x188] sm:$0xf]
    %v2110 = vld [vmem:[%s9 + $0x18c] sm:$0xf]
    %v2111 = vld [vmem:[%s9 + $0x190] sm:$0xf]
    %v2112 = vld [vmem:[%s9 + $0x194] sm:$0xf]
    %v2113 = vld [vmem:[%s9 + $0x198] sm:$0xf]
    %v2114 = vld [vmem:[%s9 + $0x19c] sm:$0xf]
    %v2115 = vld [vmem:[%s9 + $0x1a0] sm:$0xf]
    %v2116 = vld [vmem:[%s9 + $0x1a4] sm:$0xf]
    %v2117 = vld [vmem:[%s9 + $0x1a8] sm:$0xf]
    %v2118 = vld [vmem:[%s9 + $0x1ac] sm:$0xf]
    %v2119 = vld [vmem:[%s9 + $0x1b0] sm:$0xf]
    %v2120 = vld [vmem:[%s9 + $0x1b4] sm:$0xf]
    %v2121 = vld [vmem:[%s9 + $0x1b8] sm:$0xf]
    %v2122 = vld [vmem:[%s9 + $0x1bc] sm:$0xf]
    %v2123 = vld [vmem:[%s9 + $0x1c0] sm:$0xf]
    %v2124 = vld [vmem:[%s9 + $0x1c4] sm:$0xf]
    %v2125 = vld [vmem:[%s9 + $0x1c8] sm:$0xf]
    %v2126 = vld [vmem:[%s9 + $0x1cc] sm:$0xf]
    %v2127 = vld [vmem:[%s9 + $0x1d0] sm:$0xf]
    %v2128 = vld [vmem:[%s9 + $0x1d4] sm:$0xf]
    %v2129 = vld [vmem:[%s9 + $0x1d8] sm:$0xf]
    %v2130 = vld [vmem:[%s9 + $0x1dc] sm:$0xf]
    %v2131 = vld [vmem:[%s9 + $0x1e0] sm:$0xf]
    %v2132 = vld [vmem:[%s9 + $0x1e4] sm:$0xf]
    %v2133 = vld [vmem:[%s9 + $0x1e8] sm:$0xf]
    %v2134 = vld [vmem:[%s9 + $0x1ec] sm:$0xf]
    %v2135 = vld [vmem:[%s9 + $0x1f0] sm:$0xf]
    %v2136 = vld [vmem:[%s9 + $0x1f4] sm:$0xf]
    %v2137 = vld [vmem:[%s9 + $0x1f8] sm:$0xf]
    %v2138 = vld [vmem:[%s9 + $0x1fc] sm:$0xf]
    %v2139 = vld [vmem:[%s10] sm:$0x1]
    %v2141 = vlaneseq
    %v2142 = vshrl.u32 %v2141, 7
    %v2143 = vsub.s32 0, %v2142
    %v2144 = vrot.slane %v2139, %v2143
    %v2274 = vunpack.c.l.b16 %v2011
    %v2275 = vunpack.c.l.b16 %v2012
    %v2276 = vunpack.c.l.b16 %v2013
    %v2277 = vunpack.c.l.b16 %v2014
    %v2278 = vunpack.c.l.b16 %v2015
    %v2279 = vunpack.c.l.b16 %v2016
    %v2280 = vunpack.c.l.b16 %v2017
    %v2281 = vunpack.c.l.b16 %v2018
    %v2282 = vunpack.c.l.b16 %v2019
    %v2283 = vunpack.c.l.b16 %v2020
    %v2284 = vunpack.c.l.b16 %v2021
    %v2285 = vunpack.c.l.b16 %v2022
    %v2286 = vunpack.c.l.b16 %v2023
    %v2287 = vunpack.c.l.b16 %v2024
    %v2288 = vunpack.c.l.b16 %v2025
    %v2289 = vunpack.c.l.b16 %v2026
    %v2290 = vunpack.c.l.b16 %v2027
    %v2291 = vunpack.c.l.b16 %v2028
    %v2292 = vunpack.c.l.b16 %v2029
    %v2293 = vunpack.c.l.b16 %v2030
    %v2294 = vunpack.c.l.b16 %v2031
    %v2295 = vunpack.c.l.b16 %v2032
    %v2296 = vunpack.c.l.b16 %v2033
    %v2297 = vunpack.c.l.b16 %v2034
    %v2298 = vunpack.c.l.b16 %v2035
    %v2299 = vunpack.c.l.b16 %v2036
    %v2300 = vunpack.c.l.b16 %v2037
    %v2301 = vunpack.c.l.b16 %v2038
    %v2302 = vunpack.c.l.b16 %v2039
    %v2303 = vunpack.c.l.b16 %v2040
    %v2304 = vunpack.c.l.b16 %v2041
    %v2305 = vunpack.c.l.b16 %v2042
    %v2306 = vunpack.c.l.b16 %v2043
    %v2307 = vunpack.c.l.b16 %v2044
    %v2308 = vunpack.c.l.b16 %v2045
    %v2309 = vunpack.c.l.b16 %v2046
    %v2310 = vunpack.c.l.b16 %v2047
    %v2311 = vunpack.c.l.b16 %v2048
    %v2312 = vunpack.c.l.b16 %v2049
    %v2313 = vunpack.c.l.b16 %v2050
    %v2314 = vunpack.c.l.b16 %v2051
    %v2315 = vunpack.c.l.b16 %v2052
    %v2316 = vunpack.c.l.b16 %v2053
    %v2317 = vunpack.c.l.b16 %v2054
    %v2318 = vunpack.c.l.b16 %v2055
    %v2319 = vunpack.c.l.b16 %v2056
    %v2320 = vunpack.c.l.b16 %v2057
    %v2321 = vunpack.c.l.b16 %v2058
    %v2322 = vunpack.c.l.b16 %v2059
    %v2323 = vunpack.c.l.b16 %v2060
    %v2324 = vunpack.c.l.b16 %v2061
    %v2325 = vunpack.c.l.b16 %v2062
    %v2326 = vunpack.c.l.b16 %v2063
    %v2327 = vunpack.c.l.b16 %v2064
    %v2328 = vunpack.c.l.b16 %v2065
    %v2329 = vunpack.c.l.b16 %v2066
    %v2330 = vunpack.c.l.b16 %v2067
    %v2331 = vunpack.c.l.b16 %v2068
    %v2332 = vunpack.c.l.b16 %v2069
    %v2333 = vunpack.c.l.b16 %v2070
    %v2334 = vunpack.c.l.b16 %v2071
    %v2335 = vunpack.c.l.b16 %v2072
    %v2336 = vunpack.c.l.b16 %v2073
    %v2337 = vunpack.c.l.b16 %v2074
    %v2338 = vunpack.c.l.b16 %v2075
    %v2339 = vunpack.c.l.b16 %v2076
    %v2340 = vunpack.c.l.b16 %v2077
    %v2341 = vunpack.c.l.b16 %v2078
    %v2342 = vunpack.c.l.b16 %v2079
    %v2343 = vunpack.c.l.b16 %v2080
    %v2344 = vunpack.c.l.b16 %v2081
    %v2345 = vunpack.c.l.b16 %v2082
    %v2346 = vunpack.c.l.b16 %v2083
    %v2347 = vunpack.c.l.b16 %v2084
    %v2348 = vunpack.c.l.b16 %v2085
    %v2349 = vunpack.c.l.b16 %v2086
    %v2350 = vunpack.c.l.b16 %v2087
    %v2351 = vunpack.c.l.b16 %v2088
    %v2352 = vunpack.c.l.b16 %v2089
    %v2353 = vunpack.c.l.b16 %v2090
    %v2354 = vunpack.c.l.b16 %v2091
    %v2355 = vunpack.c.l.b16 %v2092
    %v2356 = vunpack.c.l.b16 %v2093
    %v2357 = vunpack.c.l.b16 %v2094
    %v2358 = vunpack.c.l.b16 %v2095
    %v2359 = vunpack.c.l.b16 %v2096
    %v2360 = vunpack.c.l.b16 %v2097
    %v2361 = vunpack.c.l.b16 %v2098
    %v2362 = vunpack.c.l.b16 %v2099
    %v2363 = vunpack.c.l.b16 %v2100
    %v2364 = vunpack.c.l.b16 %v2101
    %v2365 = vunpack.c.l.b16 %v2102
    %v2366 = vunpack.c.l.b16 %v2103
    %v2367 = vunpack.c.l.b16 %v2104
    %v2368 = vunpack.c.l.b16 %v2105
    %v2369 = vunpack.c.l.b16 %v2106
    %v2370 = vunpack.c.l.b16 %v2107
    %v2371 = vunpack.c.l.b16 %v2108
    %v2372 = vunpack.c.l.b16 %v2109
    %v2373 = vunpack.c.l.b16 %v2110
    %v2374 = vunpack.c.l.b16 %v2111
    %v2375 = vunpack.c.l.b16 %v2112
    %v2376 = vunpack.c.l.b16 %v2113
    %v2377 = vunpack.c.l.b16 %v2114
    %v2378 = vunpack.c.l.b16 %v2115
    %v2379 = vunpack.c.l.b16 %v2116
    %v2380 = vunpack.c.l.b16 %v2117
    %v2381 = vunpack.c.l.b16 %v2118
    %v2382 = vunpack.c.l.b16 %v2119
    %v2383 = vunpack.c.l.b16 %v2120
    %v2384 = vunpack.c.l.b16 %v2121
    %v2385 = vunpack.c.l.b16 %v2122
    %v2386 = vunpack.c.l.b16 %v2123
    %v2387 = vunpack.c.l.b16 %v2124
    %v2388 = vunpack.c.l.b16 %v2125
    %v2389 = vunpack.c.l.b16 %v2126
    %v2390 = vunpack.c.l.b16 %v2127
    %v2391 = vunpack.c.l.b16 %v2128
    %v2392 = vunpack.c.l.b16 %v2129
    %v2393 = vunpack.c.l.b16 %v2130
    %v2394 = vunpack.c.l.b16 %v2131
    %v2395 = vunpack.c.l.b16 %v2132
    %v2396 = vunpack.c.l.b16 %v2133
    %v2397 = vunpack.c.l.b16 %v2134
    %v2398 = vunpack.c.l.b16 %v2135
    %v2399 = vunpack.c.l.b16 %v2136
    %v2400 = vunpack.c.l.b16 %v2137
    %v2401 = vunpack.c.l.b16 %v2138
    %v2402 = vpack.c.b16 %v2275, %v2274
    %v2403 = vpack.c.b16 %v2277, %v2276
    %v2404 = vpack.c.b16 %v2279, %v2278
    %v2405 = vpack.c.b16 %v2281, %v2280
    %v2406 = vpack.c.b16 %v2283, %v2282
    %v2407 = vpack.c.b16 %v2285, %v2284
    %v2408 = vpack.c.b16 %v2287, %v2286
    %v2409 = vpack.c.b16 %v2289, %v2288
    %v2410 = vpack.c.b16 %v2291, %v2290
    %v2411 = vpack.c.b16 %v2293, %v2292
    %v2412 = vpack.c.b16 %v2295, %v2294
    %v2413 = vpack.c.b16 %v2297, %v2296
    %v2414 = vpack.c.b16 %v2299, %v2298
    %v2415 = vpack.c.b16 %v2301, %v2300
    %v2416 = vpack.c.b16 %v2303, %v2302
    %v2417 = vpack.c.b16 %v2305, %v2304
    %v2418 = vpack.c.b16 %v2307, %v2306
    %v2419 = vpack.c.b16 %v2309, %v2308
    %v2420 = vpack.c.b16 %v2311, %v2310
    %v2421 = vpack.c.b16 %v2313, %v2312
    %v2422 = vpack.c.b16 %v2315, %v2314
    %v2423 = vpack.c.b16 %v2317, %v2316
    %v2424 = vpack.c.b16 %v2319, %v2318
    %v2425 = vpack.c.b16 %v2321, %v2320
    %v2426 = vpack.c.b16 %v2323, %v2322
    %v2427 = vpack.c.b16 %v2325, %v2324
    %v2428 = vpack.c.b16 %v2327, %v2326
    %v2429 = vpack.c.b16 %v2329, %v2328
    %v2430 = vpack.c.b16 %v2331, %v2330
    %v2431 = vpack.c.b16 %v2333, %v2332
    %v2432 = vpack.c.b16 %v2335, %v2334
    %v2433 = vpack.c.b16 %v2337, %v2336
    %v2434 = vpack.c.b16 %v2339, %v2338
    %v2435 = vpack.c.b16 %v2341, %v2340
    %v2436 = vpack.c.b16 %v2343, %v2342
    %v2437 = vpack.c.b16 %v2345, %v2344
    %v2438 = vpack.c.b16 %v2347, %v2346
    %v2439 = vpack.c.b16 %v2349, %v2348
    %v2440 = vpack.c.b16 %v2351, %v2350
    %v2441 = vpack.c.b16 %v2353, %v2352
    %v2442 = vpack.c.b16 %v2355, %v2354
    %v2443 = vpack.c.b16 %v2357, %v2356
    %v2444 = vpack.c.b16 %v2359, %v2358
    %v2445 = vpack.c.b16 %v2361, %v2360
    %v2446 = vpack.c.b16 %v2363, %v2362
    %v2447 = vpack.c.b16 %v2365, %v2364
    %v2448 = vpack.c.b16 %v2367, %v2366
    %v2449 = vpack.c.b16 %v2369, %v2368
    %v2450 = vpack.c.b16 %v2371, %v2370
    %v2451 = vpack.c.b16 %v2373, %v2372
    %v2452 = vpack.c.b16 %v2375, %v2374
    %v2453 = vpack.c.b16 %v2377, %v2376
    %v2454 = vpack.c.b16 %v2379, %v2378
    %v2455 = vpack.c.b16 %v2381, %v2380
    %v2456 = vpack.c.b16 %v2383, %v2382
    %v2457 = vpack.c.b16 %v2385, %v2384
    %v2458 = vpack.c.b16 %v2387, %v2386
    %v2459 = vpack.c.b16 %v2389, %v2388
    %v2460 = vpack.c.b16 %v2391, %v2390
    %v2461 = vpack.c.b16 %v2393, %v2392
    %v2462 = vpack.c.b16 %v2395, %v2394
    %v2463 = vpack.c.b16 %v2397, %v2396
    %v2464 = vpack.c.b16 %v2399, %v2398
    %v2465 = vpack.c.b16 %v2401, %v2400
    %2530 = vmatprep.subr.bf16.mxu0 0
    %2531 = vmatpush1.bf16.msra.mxu0 %v2402
    %2532 = vmatprep.subr.bf16.mxu0 0
    %2533 = vmatpush1.bf16.msra.mxu0 %v2403
    %2534 = vmatprep.subr.bf16.mxu0 0
    %2535 = vmatpush1.bf16.msra.mxu0 %v2404
    %2536 = vmatprep.subr.bf16.mxu0 0
    %2537 = vmatpush1.bf16.msra.mxu0 %v2405
    %2538 = vmatprep.subr.bf16.mxu0 0
    %2539 = vmatpush1.bf16.msra.mxu0 %v2406
    %2540 = vmatprep.subr.bf16.mxu0 0
    %2541 = vmatpush1.bf16.msra.mxu0 %v2407
    %2542 = vmatprep.subr.bf16.mxu0 0
    %2543 = vmatpush1.bf16.msra.mxu0 %v2408
    %2544 = vmatprep.subr.bf16.mxu0 0
    %2545 = vmatpush1.bf16.msra.mxu0 %v2409
    %2546 = vmatprep.subr.bf16.mxu0 0
    %2547 = vmatpush1.bf16.msra.mxu0 %v2410
    %2548 = vmatprep.subr.bf16.mxu0 0
    %2549 = vmatpush1.bf16.msra.mxu0 %v2411
    %2550 = vmatprep.subr.bf16.mxu0 0
    %2551 = vmatpush1.bf16.msra.mxu0 %v2412
    %2552 = vmatprep.subr.bf16.mxu0 0
    %2553 = vmatpush1.bf16.msra.mxu0 %v2413
    %2554 = vmatprep.subr.bf16.mxu0 0
    %2555 = vmatpush1.bf16.msra.mxu0 %v2414
    %2556 = vmatprep.subr.bf16.mxu0 0
    %2557 = vmatpush1.bf16.msra.mxu0 %v2415
    %2558 = vmatprep.subr.bf16.mxu0 0
    %2559 = vmatpush1.bf16.msra.mxu0 %v2416
    %2560 = vmatprep.subr.bf16.mxu0 0
    %2561 = vmatpush1.bf16.msra.mxu0 %v2417
    %2562 = vmatprep.mubr.bf16.mxu0 %v2004
    %2563 = vmatmul.mubr.bf16.gmra.mrb[0].mxu0 %v2003
    %v2564 = vpop.f32.mrb[0].mxu0
    %v2565 = vadd.f32 %v2144, %v2564
    %v2566 = vpop.f32.mrb[0].mxu0
    %v2567 = vpop.f32.mrb[0].mxu0
    %v2568 = vpop.f32.mrb[0].mxu0
    %2569 = vdwg.mxu0
    %2570 = vmatprep.subr.bf16.mxu0 0
    %2571 = vmatpush1.bf16.msra.mxu0 %v2418
    %2572 = vmatprep.subr.bf16.mxu0 0
    %2573 = vmatpush1.bf16.msra.mxu0 %v2419
    %2574 = vmatprep.subr.bf16.mxu0 0
    %2575 = vmatpush1.bf16.msra.mxu0 %v2420
    %2576 = vmatprep.subr.bf16.mxu0 0
    %2577 = vmatpush1.bf16.msra.mxu0 %v2421
    %2578 = vmatprep.subr.bf16.mxu0 0
    %2579 = vmatpush1.bf16.msra.mxu0 %v2422
    %2580 = vmatprep.subr.bf16.mxu0 0
    %2581 = vmatpush1.bf16.msra.mxu0 %v2423
    %2582 = vmatprep.subr.bf16.mxu0 0
    %2583 = vmatpush1.bf16.msra.mxu0 %v2424
    %2584 = vmatprep.subr.bf16.mxu0 0
    %2585 = vmatpush1.bf16.msra.mxu0 %v2425
    %2586 = vmatprep.subr.bf16.mxu0 0
    %2587 = vmatpush1.bf16.msra.mxu0 %v2426
    %2588 = vmatprep.subr.bf16.mxu0 0
    %2589 = vmatpush1.bf16.msra.mxu0 %v2427
    %2590 = vmatprep.subr.bf16.mxu0 0
    %2591 = vmatpush1.bf16.msra.mxu0 %v2428
    %2592 = vmatprep.subr.bf16.mxu0 0
    %2593 = vmatpush1.bf16.msra.mxu0 %v2429
    %2594 = vmatprep.subr.bf16.mxu0 0
    %2595 = vmatpush1.bf16.msra.mxu0 %v2430
    %2596 = vmatprep.subr.bf16.mxu0 0
    %2597 = vmatpush1.bf16.msra.mxu0 %v2431
    %2598 = vmatprep.subr.bf16.mxu0 0
    %2599 = vmatpush1.bf16.msra.mxu0 %v2432
    %2600 = vmatprep.subr.bf16.mxu0 0
    %2601 = vmatpush1.bf16.msra.mxu0 %v2433
    %2602 = vmatprep.mubr.bf16.mxu0 %v2006
    %2603 = vmatmul.mubr.bf16.gmra.mrb[0].mxu0 %v2005
    %v2604 = vpop.f32.mrb[0].mxu0
    %v2605 = vadd.f32 %v2565, %v2604
    %v2606 = vpop.f32.mrb[0].mxu0
    %v2607 = vpop.f32.mrb[0].mxu0
    %v2608 = vpop.f32.mrb[0].mxu0
    %2609 = vdwg.mxu0
    %2610 = vmatprep.subr.bf16.mxu0 0
    %2611 = vmatpush1.bf16.msra.mxu0 %v2434
    %2612 = vmatprep.subr.bf16.mxu0 0
    %2613 = vmatpush1.bf16.msra.mxu0 %v2435
    %2614 = vmatprep.subr.bf16.mxu0 0
    %2615 = vmatpush1.bf16.msra.mxu0 %v2436
    %2616 = vmatprep.subr.bf16.mxu0 0
    %2617 = vmatpush1.bf16.msra.mxu0 %v2437
    %2618 = vmatprep.subr.bf16.mxu0 0
    %2619 = vmatpush1.bf16.msra.mxu0 %v2438
    %2620 = vmatprep.subr.bf16.mxu0 0
    %2621 = vmatpush1.bf16.msra.mxu0 %v2439
    %2622 = vmatprep.subr.bf16.mxu0 0
    %2623 = vmatpush1.bf16.msra.mxu0 %v2440
    %2624 = vmatprep.subr.bf16.mxu0 0
    %2625 = vmatpush1.bf16.msra.mxu0 %v2441
    %2626 = vmatprep.subr.bf16.mxu0 0
    %2627 = vmatpush1.bf16.msra.mxu0 %v2442
    %2628 = vmatprep.subr.bf16.mxu0 0
    %2629 = vmatpush1.bf16.msra.mxu0 %v2443
    %2630 = vmatprep.subr.bf16.mxu0 0
    %2631 = vmatpush1.bf16.msra.mxu0 %v2444
    %2632 = vmatprep.subr.bf16.mxu0 0
    %2633 = vmatpush1.bf16.msra.mxu0 %v2445
    %2634 = vmatprep.subr.bf16.mxu0 0
    %2635 = vmatpush1.bf16.msra.mxu0 %v2446
    %2636 = vmatprep.subr.bf16.mxu0 0
    %2637 = vmatpush1.bf16.msra.mxu0 %v2447
    %2638 = vmatprep.subr.bf16.mxu0 0
    %2639 = vmatpush1.bf16.msra.mxu0 %v2448
    %2640 = vmatprep.subr.bf16.mxu0 0
    %2641 = vmatpush1.bf16.msra.mxu0 %v2449
    %2642 = vmatprep.mubr.bf16.mxu0 %v2008
    %2643 = vmatmul.mubr.bf16.gmra.mrb[0].mxu0 %v2007
    %v2644 = vpop.f32.mrb[0].mxu0
    %v2645 = vadd.f32 %v2605, %v2644
    %v2646 = vpop.f32.mrb[0].mxu0
    %v2647 = vpop.f32.mrb[0].mxu0
    %v2648 = vpop.f32.mrb[0].mxu0
    %2649 = vdwg.mxu0
    %2650 = vmatprep.subr.bf16.mxu0 0
    %2651 = vmatpush1.bf16.msra.mxu0 %v2450
    %2652 = vmatprep.subr.bf16.mxu0 0
    %2653 = vmatpush1.bf16.msra.mxu0 %v2451
    %2654 = vmatprep.subr.bf16.mxu0 0
    %2655 = vmatpush1.bf16.msra.mxu0 %v2452
    %2656 = vmatprep.subr.bf16.mxu0 0
    %2657 = vmatpush1.bf16.msra.mxu0 %v2453
    %2658 = vmatprep.subr.bf16.mxu0 0
    %2659 = vmatpush1.bf16.msra.mxu0 %v2454
    %2660 = vmatprep.subr.bf16.mxu0 0
    %2661 = vmatpush1.bf16.msra.mxu0 %v2455
    %2662 = vmatprep.subr.bf16.mxu0 0
    %2663 = vmatpush1.bf16.msra.mxu0 %v2456
    %2664 = vmatprep.subr.bf16.mxu0 0
    %2665 = vmatpush1.bf16.msra.mxu0 %v2457
    %2666 = vmatprep.subr.bf16.mxu0 0
    %2667 = vmatpush1.bf16.msra.mxu0 %v2458
    %2668 = vmatprep.subr.bf16.mxu0 0
    %2669 = vmatpush1.bf16.msra.mxu0 %v2459
    %2670 = vmatprep.subr.bf16.mxu0 0
    %2671 = vmatpush1.bf16.msra.mxu0 %v2460
    %2672 = vmatprep.subr.bf16.mxu0 0
    %2673 = vmatpush1.bf16.msra.mxu0 %v2461
    %2674 = vmatprep.subr.bf16.mxu0 0
    %2675 = vmatpush1.bf16.msra.mxu0 %v2462
    %2676 = vmatprep.subr.bf16.mxu0 0
    %2677 = vmatpush1.bf16.msra.mxu0 %v2463
    %2678 = vmatprep.subr.bf16.mxu0 0
    %2679 = vmatpush1.bf16.msra.mxu0 %v2464
    %2680 = vmatprep.subr.bf16.mxu0 0
    %2681 = vmatpush1.bf16.msra.mxu0 %v2465
    %2682 = vmatprep.mubr.bf16.mxu0 %v2010
    %2683 = vmatmul.mubr.bf16.gmra.mrb[0].mxu0 %v2009
    %v2684 = vpop.f32.mrb[0].mxu0
    %v2685 = vadd.f32 %v2645, %v2684
    %v2686 = vpop.f32.mrb[0].mxu0
    %v2687 = vpop.f32.mrb[0].mxu0
    %v2688 = vpop.f32.mrb[0].mxu0
    %2689 = vdwg.mxu0
    %2691 = vrot.lane.b32.xlu0 %v2685, 127
    %v2692 = vpop.permute.xlu0 %2691
    %vm2694 = vcmask 41984
    %v2695 = vsel %vm2694, %v2692, 0.0
    %2696 = vadd.xlane.f32.xlu0 %v2695
    %v2697 = vpop.xlane.xlu0 %2696
    %v2698 = vrot.slane %v2697, 4
    %v2699 = vadd.f32 %v2697, %v2698
    %v2700 = vrot.slane %v2699, 2
    %v2701 = vadd.f32 %v2699, %v2700
    %v2702 = vrot.slane %v2701, 1
    %v2703 = vadd.f32 %v2701, %v2702
    %s2704 = vtos %v2703
    %v2705 = vstv %s2704
    %v2706 = vrcp.pop 12.0
    %v2707 = vmul.f32 %v2705, %v2706
    %2708 = vset.pattern.permute.xlu0 0
    %2709 = vperm.xlu0 %2708, %v2685
    %v2710 = vpop.permute.xlu0 %2709
    %v2712 = vadd.f32 %v2710, %v2685
    %v2713 = vsub.f32 %v2712, %v2707
    %2715 = vrot.lane.b32.xlu0 %v2713, 127
    %v2716 = vpop.permute.xlu0 %2715
    %2718 = vst.msk [vmem:[#allocation2] sm:$0x3] %vm2694, %v2716
    // Predicated region
    $region46: #{dqn_forward.1} parent=1 // pred_check
      _
    $region47: #{dqn_forward.1} parent=1 // pred_check_branch
      %2720 = sbr.rel (0) target = $region49
    $region48: #{dqn_forward.1} parent=1 // pred_region
      %s2722 = ssub.s32 32, 32
      %2723 = vsyncadd [#allocation3], %s2722
      %s2725 = sshll.u32 [#allocation2], 4
      %s2726 = int_to_ptr.vmem [resolvable:$true] %s2725
      %2728 = dma.vmem_to_hbm [thread:$0]  %s2726, 32, %s11, [#allocation3]
    $region49: #{dqn_forward.1} parent=1 // pred_fallthru
      _
    // Predicated region
    $region50: #{dqn_forward.1} parent=1 // pred_check
      _
    $region51: #{dqn_forward.1} parent=1 // pred_check_branch
      %2730 = sbr.rel (0) target = $region53
    $region52: #{dqn_forward.1} parent=1 // pred_region
      %2731 = dma.done [#allocation3], 32
    $region53: #{dqn_forward.1} parent=1 // pred_fallthru
      _
    %2732 = vsyncpa [#allocation3], 1

</llo_original>
